<compile_context>
chip_gen: v6e
topology: v6e:2x2x1
jax: 0.10.0
libtpu: 0.0.40
codegen_flags: <defaults>
</compile_context>

<pallas_src>
import jax
import jax.numpy as jnp
from jax.experimental import pallas as pl
from jax.experimental.pallas import tpu as pltpu

K = 7     # conv kernel size
PAD = 3   # conv padding


def _round_up(a, b):
    return (a + b - 1) // b * b


def _make_kernel(C, TC, HW, W, M, L, ragged):
    def kernel(w_ref, b_ref, mask_ref, x_ref, o_ref, sum_ref, max_ref, fpad_ref):
        # w_ref   : (2*K*K,) SMEM -- BN-scaled conv weights, [in_ch, ky, kx] row-major
        # b_ref   : (1,)     SMEM -- fused conv bias + BN shift
        # mask_ref: (K, HW)  VMEM -- per-kx column validity (1.0/0.0)
        # x_ref   : (1, TC, HW) VMEM lane-dense input tile
        # o_ref   : (1, 1, HW)  VMEM lane-dense output block
        # sum_ref : (1, HW) f32 scratch -- running channel sum
        # max_ref : (1, HW) f32 scratch -- running channel max
        # fpad_ref: (2, L)  f32 scratch -- zero-padded flat avg/max map
        c_idx = pl.program_id(1)
        last = pl.num_programs(1) - 1

        @pl.when(c_idx == 0)
        def _init():
            sum_ref[...] = jnp.zeros((1, HW), jnp.float32)
            max_ref[...] = jnp.full((1, HW), -jnp.inf, jnp.float32)

        def _accum(masked):
            xb = x_ref[0]                                   # (TC, HW), native dtype
            if masked:
                rem = C % TC
                valid = jax.lax.broadcasted_iota(jnp.int32, (TC, HW), 0) < rem
                xs = jnp.where(valid, xb, 0.0)
                xm = jnp.where(valid, xb, -jnp.inf)
            else:
                xs = xb
                xm = xb
            # Accumulate in f32 without materializing a full f32 tile copy.
            sum_ref[...] += jnp.sum(xs, axis=0, keepdims=True, dtype=jnp.float32)
            max_ref[...] = jnp.maximum(
                max_ref[...], jnp.max(xm, axis=0, keepdims=True).astype(jnp.float32))

        if ragged:
            @pl.when(c_idx == last)
            def _():
                _accum(True)

            @pl.when(c_idx != last)
            def _():
                _accum(False)
        else:
            _accum(False)

        @pl.when(c_idx == last)
        def _finalize():
            # Zero-padded flat map: index M + y*W + x holds map[y, x]; the halo of
            # M >= 3*W+3 zeros on each side absorbs out-of-range rows.
            fpad_ref[...] = jnp.zeros((2, L), jnp.float32)
            fpad_ref[0:1, M:M + HW] = sum_ref[...] * (1.0 / C)   # avg channel
            fpad_ref[1:2, M:M + HW] = max_ref[...]               # max channel

            ws = [w_ref[i] for i in range(2 * K * K)]            # SMEM scalars, read once
            acc = jnp.full((1, HW), b_ref[0], jnp.float32)       # fused conv+BN bias
            for c in range(2):                                   # ch0 = avg, ch1 = max
                f = fpad_ref[c:c + 1, :]                         # (1, L)
                for kx in range(K):                              # kx-outer, ky-inner
                    dx = kx - PAD
                    part = None
                    for ky in range(K):
                        off = M + (ky - PAD) * W + dx
                        t = f[:, off:off + HW] * ws[c * K * K + ky * K + kx]
                        part = t if part is None else part + t
                    if dx != 0:
                        # Mask columns that wrapped across a row boundary.
                        part = part * mask_ref[kx:kx + 1, :]
                    acc = acc + part
            o_ref[0] = jax.nn.sigmoid(acc).astype(o_ref.dtype)

    return kernel


def spatial_attention(x, conv_w, conv_b, bn_gamma, bn_beta, bn_mean, bn_var, eps=1e-5):
    """x: (N, C, H, W).  Returns (N, 1, H, W) spatial attention map (x.dtype)."""
    N, C, H, W = x.shape
    HW = H * W

    # Fold inference-mode BatchNorm2d(1) into the conv weights / bias.
    # TODO(synk): training-mode BatchNorm (batch statistics) not implemented; uses running stats.
    scale = (bn_gamma / jnp.sqrt(bn_var + eps)).astype(jnp.float32)          # (1,)
    w_eff = (conv_w.astype(jnp.float32) * scale[:, None, None, None])[0]     # (2, 7, 7)
    b_eff = (scale * conv_b + (bn_beta - scale * bn_mean)).astype(jnp.float32)
    w_flat = w_eff.reshape(-1)                                               # (98,)

    # Per-kx column-validity masks for the flat-domain conv (fix row wrap-around).
    xs_col = jnp.arange(HW, dtype=jnp.int32) % W
    mask = jnp.stack([((xs_col + (kx - PAD) >= 0) & (xs_col + (kx - PAD) < W))
                      .astype(jnp.float32) for kx in range(K)])              # (K, HW)

    # ---- channel-tile sizing from the padded VMEM footprint ----
    itemsize = jnp.dtype(x.dtype).itemsize
    pack = 8 * max(1, 4 // itemsize)              # sublane packing: 8 f32, 16 bf16
    row_bytes = _round_up(HW, 128) * itemsize     # one lane-dense channel row in VMEM
    try:
        vmem_cap = int(pltpu.get_tpu_info().vmem_capacity_bytes)
    except Exception:
        vmem_cap = 64 * 1024 * 1024               # v7x-safe fallback
    vmem_limit = int(min(vmem_cap * 3 // 4, 96 * 1024 * 1024))

    M = _round_up(PAD * W + PAD, 128)             # 128-aligned halo for the flat conv
    L = HW + 2 * M
    scratch_bytes = 4 * (2 * 8 * _round_up(HW, 128) + 8 * _round_up(L, 128))
    per_buf = min(12 * 1024 * 1024,
                  max(pack * row_bytes, (vmem_limit - scratch_bytes - (2 << 20)) // 3))
    TC = per_buf // row_bytes
    if TC >= C:
        TC = C                                    # full channel dim in one tile
    else:
        TC = max(pack, (TC // pack) * pack)       # keep (sublane) block rule satisfied
    num_c = (C + TC - 1) // TC
    ragged = (C % TC) != 0

    kernel = _make_kernel(C, TC, HW, W, M, L, ragged)

    # TODO(synk): for N=1 on v7x (2 TensorCores) a second 'parallel' axis splitting
    # the spatial map (with a 3-row halo) would use both cores; not implemented.
    out = pl.pallas_call(
        kernel,
        out_shape=jax.ShapeDtypeStruct((N, 1, HW), x.dtype),
        grid=(N, num_c),
        in_specs=[
            pl.BlockSpec(memory_space=pltpu.MemorySpace.SMEM),       # fused conv weights
            pl.BlockSpec(memory_space=pltpu.MemorySpace.SMEM),       # fused bias
            pl.BlockSpec((K, HW), lambda n, c: (0, 0)),              # kx column masks
            pl.BlockSpec((1, TC, HW), lambda n, c: (n, c, 0)),       # lane-dense input tile
        ],
        out_specs=pl.BlockSpec((1, 1, HW), lambda n, c: (n, 0, 0)),
        scratch_shapes=[
            pltpu.VMEM((1, HW), jnp.float32),       # running channel sum
            pltpu.VMEM((1, HW), jnp.float32),       # running channel max
            pltpu.VMEM((2, L), jnp.float32),        # zero-padded flat avg/max map
        ],
        compiler_params=pltpu.CompilerParams(
            dimension_semantics=("parallel", "arbitrary"),
            vmem_limit_bytes=vmem_limit,
        ),
    )(w_flat, b_eff, mask, x.reshape(N, C, HW))

    return out.reshape(N, 1, H, W)


def _reference(x, conv_w, conv_b, g, b, m, v, eps=1e-5):
    """Pure-JAX reference matching the PyTorch module (eval-mode BN)."""
    avg = jnp.mean(x, axis=1, keepdims=True)
    mx = jnp.max(x, axis=1, keepdims=True)
    f = jnp.concatenate([avg, mx], axis=1)
    y = jax.lax.conv_general_dilated(
        f, conv_w, window_strides=(1, 1), padding=((PAD, PAD), (PAD, PAD)),
        dimension_numbers=("NCHW", "OIHW", "NCHW"),
    ) + conv_b[None, :, None, None]
    y = (g[None, :, None, None] * (y - m[None, :, None, None])
         / jnp.sqrt(v[None, :, None, None] + eps) + b[None, :, None, None])
    return jax.nn.sigmoid(y)


if __name__ == "__main__":
    key = jax.random.PRNGKey(0)
    k1, k2, k3, k4, k5 = jax.random.split(key, 5)

    # Deterministic synthetic parameters (shapes from nn.Conv2d(2,1,7) + BatchNorm2d(1)).
    x = jax.random.normal(k1, (2, 4, 16, 16), jnp.float32)
    conv_w = jax.random.normal(k2, (1, 2, 7, 7), jnp.float32) * 0.1
    conv_b = jax.random.normal(k3, (1,), jnp.float32) * 0.1
    bn_gamma = jnp.ones((1,), jnp.float32)
    bn_beta = jnp.zeros((1,), jnp.float32)
    bn_mean = jax.random.normal(k4, (1,), jnp.float32) * 0.05
    bn_var = jnp.abs(jax.random.normal(k5, (1,), jnp.float32)) * 0.1 + 1.0

    out = spatial_attention(x, conv_w, conv_b, bn_gamma, bn_beta, bn_mean, bn_var)
    out = jax.block_until_ready(out)

    ref = _reference(x, conv_w, conv_b, bn_gamma, bn_beta, bn_mean, bn_var)
    assert out.shape == (2, 1, 16, 16), out.shape
    err = float(jnp.max(jnp.abs(out.astype(jnp.float32) - ref)))
    assert jnp.allclose(out.astype(jnp.float32), ref, atol=1e-5, rtol=1e-5), err
    print("KERNEL_OK")
</pallas_src>

<mosaic_0001>
module attributes {stable_mosaic.version = 11 : i64} {
  func.func @kernel(%arg0: i32, %arg1: i32, %arg2: memref<98xf32, #tpu.memory_space<smem>>, %arg3: memref<1xf32, #tpu.memory_space<smem>>, %arg4: memref<7x256xf32, #tpu.memory_space<vmem>>, %arg5: memref<1x4x256xf32, #tpu.memory_space<vmem>>, %arg6: memref<1x1x256xf32, #tpu.memory_space<vmem>>, %arg7: memref<1x256xf32, #tpu.memory_space<vmem>>, %arg8: memref<1x256xf32, #tpu.memory_space<vmem>>, %arg9: memref<2x512xf32, #tpu.memory_space<vmem>>) attributes {dimension_semantics = [#tpu.dimension_semantics<parallel>, #tpu.dimension_semantics<arbitrary>], iteration_bounds = array<i64: 2, 1>, scalar_prefetch = 0 : i64, scratch_operands = 3 : i64, tpu.core_type = #tpu.core_type<tc>, window_params = [{transform_indices = @transform_0, window_bounds = array<i64: 98>}, {transform_indices = @transform_1, window_bounds = array<i64: 1>}, {pipeline_mode = #tpu.pipeline_mode<synchronous>, transform_indices = @transform_2, window_bounds = array<i64: 7, 256>}, {transform_indices = @transform_3, window_bounds = array<i64: 1, 4, 256>}, {transform_indices = @transform_4, window_bounds = array<i64: 1, 1, 256>}]} {
    %c0_i32 = arith.constant 0 : i32
    %0 = arith.cmpi eq, %arg1, %c0_i32 : i32
    %1 = arith.extui %0 : i1 to i32
    %c0_i32_0 = arith.constant 0 : i32
    %2 = arith.cmpi ne, %1, %c0_i32_0 : i32
    scf.if %2 {
      %cst_14 = arith.constant 0.000000e+00 : f32
      %18 = vector.broadcast %cst_14 : f32 to vector<1x256xf32>
      %c0_15 = arith.constant 0 : index
      %c0_16 = arith.constant 0 : index
      %19 = vector.load %arg7[%c0_15, %c0_16] : memref<1x256xf32, #tpu.memory_space<vmem>>, vector<1x256xf32>
      tpu.vector_store %arg7[%c0_15, %c0_16], %18 {strides = array<i32>} : memref<1x256xf32, #tpu.memory_space<vmem>>, vector<1x256xf32>,
      %cst_17 = arith.constant 0xFF800000 : f32
      %20 = vector.broadcast %cst_17 : f32 to vector<1x256xf32>
      %c0_18 = arith.constant 0 : index
      %c0_19 = arith.constant 0 : index
      %21 = vector.load %arg8[%c0_18, %c0_19] : memref<1x256xf32, #tpu.memory_space<vmem>>, vector<1x256xf32>
      tpu.vector_store %arg8[%c0_18, %c0_19], %20 {strides = array<i32>} : memref<1x256xf32, #tpu.memory_space<vmem>>, vector<1x256xf32>,
    } else {
    }
    %c0 = arith.constant 0 : index
    %c0_1 = arith.constant 0 : index
    %c0_2 = arith.constant 0 : index
    %3 = vector.load %arg5[%c0, %c0_1, %c0_2] : memref<1x4x256xf32, #tpu.memory_space<vmem>>, vector<1x4x256xf32>
    %4 = vector.shape_cast %3 : vector<1x4x256xf32> to vector<4x256xf32>
    %c0_3 = arith.constant 0 : index
    %c0_4 = arith.constant 0 : index
    %5 = vector.load %arg7[%c0_3, %c0_4] : memref<1x256xf32, #tpu.memory_space<vmem>>, vector<1x256xf32>
    %cst = arith.constant dense<0.000000e+00> : vector<256xf32>
    %6 = vector.multi_reduction <add>, %4, %cst [0] : vector<4x256xf32> to vector<256xf32>
    %7 = vector.shape_cast %6 : vector<256xf32> to vector<1x256xf32>
    %8 = arith.addf %5, %7 : vector<1x256xf32>
    %c0_5 = arith.constant 0 : index
    %c0_6 = arith.constant 0 : index
    %9 = vector.load %arg7[%c0_5, %c0_6] : memref<1x256xf32, #tpu.memory_space<vmem>>, vector<1x256xf32>
    tpu.vector_store %arg7[%c0_5, %c0_6], %8 {strides = array<i32>} : memref<1x256xf32, #tpu.memory_space<vmem>>, vector<1x256xf32>,
    %c0_7 = arith.constant 0 : index
    %c0_8 = arith.constant 0 : index
    %10 = vector.load %arg8[%c0_7, %c0_8] : memref<1x256xf32, #tpu.memory_space<vmem>>, vector<1x256xf32>
    %cst_9 = arith.constant dense<0xFF800000> : vector<256xf32>
    %11 = vector.multi_reduction <maximumf>, %4, %cst_9 [0] : vector<4x256xf32> to vector<256xf32>
    %12 = vector.shape_cast %11 : vector<256xf32> to vector<1x256xf32>
    %13 = arith.maximumf %10, %12 : vector<1x256xf32>
    %c0_10 = arith.constant 0 : index
    %c0_11 = arith.constant 0 : index
    %14 = vector.load %arg8[%c0_10, %c0_11] : memref<1x256xf32, #tpu.memory_space<vmem>>, vector<1x256xf32>
    tpu.vector_store %arg8[%c0_10, %c0_11], %13 {strides = array<i32>} : memref<1x256xf32, #tpu.memory_space<vmem>>, vector<1x256xf32>,
    %c0_i32_12 = arith.constant 0 : i32
    %15 = arith.cmpi eq, %arg1, %c0_i32_12 : i32
    %16 = arith.extui %15 : i1 to i32
    %c0_i32_13 = arith.constant 0 : i32
    %17 = arith.cmpi ne, %16, %c0_i32_13 : i32
    scf.if %17 {
      %cst_14 = arith.constant 0.000000e+00 : f32
      %18 = vector.broadcast %cst_14 : f32 to vector<2x512xf32>
      %c0_15 = arith.constant 0 : index
      %c0_16 = arith.constant 0 : index
      %19 = vector.load %arg9[%c0_15, %c0_16] : memref<2x512xf32, #tpu.memory_space<vmem>>, vector<2x512xf32>
      tpu.vector_store %arg9[%c0_15, %c0_16], %18 {strides = array<i32>} : memref<2x512xf32, #tpu.memory_space<vmem>>, vector<2x512xf32>,
      %c0_17 = arith.constant 0 : index
      %c0_18 = arith.constant 0 : index
      %20 = vector.load %arg7[%c0_17, %c0_18] : memref<1x256xf32, #tpu.memory_space<vmem>>, vector<1x256xf32>
      %cst_19 = arith.constant 2.500000e-01 : f32
      %21 = vector.broadcast %cst_19 : f32 to vector<1x256xf32>
      %22 = arith.mulf %20, %21 : vector<1x256xf32>
      %c0_20 = arith.constant 0 : index
      %c128 = arith.constant 128 : index
      %23 = vector.load %arg9[%c0_20, %c128] : memref<2x512xf32, #tpu.memory_space<vmem>>, vector<1x256xf32>
      tpu.vector_store %arg9[%c0_20, %c128], %22 {strides = array<i32>} : memref<2x512xf32, #tpu.memory_space<vmem>>, vector<1x256xf32>,
      %c0_21 = arith.constant 0 : index
      %c0_22 = arith.constant 0 : index
      %24 = vector.load %arg8[%c0_21, %c0_22] : memref<1x256xf32, #tpu.memory_space<vmem>>, vector<1x256xf32>
      %c1 = arith.constant 1 : index
      %c128_23 = arith.constant 128 : index
      %25 = vector.load %arg9[%c1, %c128_23] : memref<2x512xf32, #tpu.memory_space<vmem>>, vector<1x256xf32>
      tpu.vector_store %arg9[%c1, %c128_23], %24 {strides = array<i32>} : memref<2x512xf32, #tpu.memory_space<vmem>>, vector<1x256xf32>,
      %c0_24 = arith.constant 0 : index
      %26 = memref.load %arg2[%c0_24] : memref<98xf32, #tpu.memory_space<smem>>
      %c1_25 = arith.constant 1 : index
      %27 = memref.load %arg2[%c1_25] : memref<98xf32, #tpu.memory_space<smem>>
      %c2 = arith.constant 2 : index
      %28 = memref.load %arg2[%c2] : memref<98xf32, #tpu.memory_space<smem>>
      %c3 = arith.constant 3 : index
      %29 = memref.load %arg2[%c3] : memref<98xf32, #tpu.memory_space<smem>>
      %c4 = arith.constant 4 : index
      %30 = memref.load %arg2[%c4] : memref<98xf32, #tpu.memory_space<smem>>
      %c5 = arith.constant 5 : index
      %31 = memref.load %arg2[%c5] : memref<98xf32, #tpu.memory_space<smem>>
      %c6 = arith.constant 6 : index
      %32 = memref.load %arg2[%c6] : memref<98xf32, #tpu.memory_space<smem>>
      %c7 = arith.constant 7 : index
      %33 = memref.load %arg2[%c7] : memref<98xf32, #tpu.memory_space<smem>>
      %c8 = arith.constant 8 : index
      %34 = memref.load %arg2[%c8] : memref<98xf32, #tpu.memory_space<smem>>
      %c9 = arith.constant 9 : index
      %35 = memref.load %arg2[%c9] : memref<98xf32, #tpu.memory_space<smem>>
      %c10 = arith.constant 10 : index
      %36 = memref.load %arg2[%c10] : memref<98xf32, #tpu.memory_space<smem>>
      %c11 = arith.constant 11 : index
      %37 = memref.load %arg2[%c11] : memref<98xf32, #tpu.memory_space<smem>>
      %c12 = arith.constant 12 : index
      %38 = memref.load %arg2[%c12] : memref<98xf32, #tpu.memory_space<smem>>
      %c13 = arith.constant 13 : index
      %39 = memref.load %arg2[%c13] : memref<98xf32, #tpu.memory_space<smem>>
      %c14 = arith.constant 14 : index
      %40 = memref.load %arg2[%c14] : memref<98xf32, #tpu.memory_space<smem>>
      %c15 = arith.constant 15 : index
      %41 = memref.load %arg2[%c15] : memref<98xf32, #tpu.memory_space<smem>>
      %c16 = arith.constant 16 : index
      %42 = memref.load %arg2[%c16] : memref<98xf32, #tpu.memory_space<smem>>
      %c17 = arith.constant 17 : index
      %43 = memref.load %arg2[%c17] : memref<98xf32, #tpu.memory_space<smem>>
      %c18 = arith.constant 18 : index
      %44 = memref.load %arg2[%c18] : memref<98xf32, #tpu.memory_space<smem>>
      %c19 = arith.constant 19 : index
      %45 = memref.load %arg2[%c19] : memref<98xf32, #tpu.memory_space<smem>>
      %c20 = arith.constant 20 : index
      %46 = memref.load %arg2[%c20] : memref<98xf32, #tpu.memory_space<smem>>
      %c21 = arith.constant 21 : index
      %47 = memref.load %arg2[%c21] : memref<98xf32, #tpu.memory_space<smem>>
      %c22 = arith.constant 22 : index
      %48 = memref.load %arg2[%c22] : memref<98xf32, #tpu.memory_space<smem>>
      %c23 = arith.constant 23 : index
      %49 = memref.load %arg2[%c23] : memref<98xf32, #tpu.memory_space<smem>>
      %c24 = arith.constant 24 : index
      %50 = memref.load %arg2[%c24] : memref<98xf32, #tpu.memory_space<smem>>
      %c25 = arith.constant 25 : index
      %51 = memref.load %arg2[%c25] : memref<98xf32, #tpu.memory_space<smem>>
      %c26 = arith.constant 26 : index
      %52 = memref.load %arg2[%c26] : memref<98xf32, #tpu.memory_space<smem>>
      %c27 = arith.constant 27 : index
      %53 = memref.load %arg2[%c27] : memref<98xf32, #tpu.memory_space<smem>>
      %c28 = arith.constant 28 : index
      %54 = memref.load %arg2[%c28] : memref<98xf32, #tpu.memory_space<smem>>
      %c29 = arith.constant 29 : index
      %55 = memref.load %arg2[%c29] : memref<98xf32, #tpu.memory_space<smem>>
      %c30 = arith.constant 30 : index
      %56 = memref.load %arg2[%c30] : memref<98xf32, #tpu.memory_space<smem>>
      %c31 = arith.constant 31 : index
      %57 = memref.load %arg2[%c31] : memref<98xf32, #tpu.memory_space<smem>>
      %c32 = arith.constant 32 : index
      %58 = memref.load %arg2[%c32] : memref<98xf32, #tpu.memory_space<smem>>
      %c33 = arith.constant 33 : index
      %59 = memref.load %arg2[%c33] : memref<98xf32, #tpu.memory_space<smem>>
      %c34 = arith.constant 34 : index
      %60 = memref.load %arg2[%c34] : memref<98xf32, #tpu.memory_space<smem>>
      %c35 = arith.constant 35 : index
      %61 = memref.load %arg2[%c35] : memref<98xf32, #tpu.memory_space<smem>>
      %c36 = arith.constant 36 : index
      %62 = memref.load %arg2[%c36] : memref<98xf32, #tpu.memory_space<smem>>
      %c37 = arith.constant 37 : index
      %63 = memref.load %arg2[%c37] : memref<98xf32, #tpu.memory_space<smem>>
      %c38 = arith.constant 38 : index
      %64 = memref.load %arg2[%c38] : memref<98xf32, #tpu.memory_space<smem>>
      %c39 = arith.constant 39 : index
      %65 = memref.load %arg2[%c39] : memref<98xf32, #tpu.memory_space<smem>>
      %c40 = arith.constant 40 : index
      %66 = memref.load %arg2[%c40] : memref<98xf32, #tpu.memory_space<smem>>
      %c41 = arith.constant 41 : index
      %67 = memref.load %arg2[%c41] : memref<98xf32, #tpu.memory_space<smem>>
      %c42 = arith.constant 42 : index
      %68 = memref.load %arg2[%c42] : memref<98xf32, #tpu.memory_space<smem>>
      %c43 = arith.constant 43 : index
      %69 = memref.load %arg2[%c43] : memref<98xf32, #tpu.memory_space<smem>>
      %c44 = arith.constant 44 : index
      %70 = memref.load %arg2[%c44] : memref<98xf32, #tpu.memory_space<smem>>
      %c45 = arith.constant 45 : index
      %71 = memref.load %arg2[%c45] : memref<98xf32, #tpu.memory_space<smem>>
      %c46 = arith.constant 46 : index
      %72 = memref.load %arg2[%c46] : memref<98xf32, #tpu.memory_space<smem>>
      %c47 = arith.constant 47 : index
      %73 = memref.load %arg2[%c47] : memref<98xf32, #tpu.memory_space<smem>>
      %c48 = arith.constant 48 : index
      %74 = memref.load %arg2[%c48] : memref<98xf32, #tpu.memory_space<smem>>
      %c49 = arith.constant 49 : index
      %75 = memref.load %arg2[%c49] : memref<98xf32, #tpu.memory_space<smem>>
      %c50 = arith.constant 50 : index
      %76 = memref.load %arg2[%c50] : memref<98xf32, #tpu.memory_space<smem>>
      %c51 = arith.constant 51 : index
      %77 = memref.load %arg2[%c51] : memref<98xf32, #tpu.memory_space<smem>>
      %c52 = arith.constant 52 : index
      %78 = memref.load %arg2[%c52] : memref<98xf32, #tpu.memory_space<smem>>
      %c53 = arith.constant 53 : index
      %79 = memref.load %arg2[%c53] : memref<98xf32, #tpu.memory_space<smem>>
      %c54 = arith.constant 54 : index
      %80 = memref.load %arg2[%c54] : memref<98xf32, #tpu.memory_space<smem>>
      %c55 = arith.constant 55 : index
      %81 = memref.load %arg2[%c55] : memref<98xf32, #tpu.memory_space<smem>>
      %c56 = arith.constant 56 : index
      %82 = memref.load %arg2[%c56] : memref<98xf32, #tpu.memory_space<smem>>
      %c57 = arith.constant 57 : index
      %83 = memref.load %arg2[%c57] : memref<98xf32, #tpu.memory_space<smem>>
      %c58 = arith.constant 58 : index
      %84 = memref.load %arg2[%c58] : memref<98xf32, #tpu.memory_space<smem>>
      %c59 = arith.constant 59 : index
      %85 = memref.load %arg2[%c59] : memref<98xf32, #tpu.memory_space<smem>>
      %c60 = arith.constant 60 : index
      %86 = memref.load %arg2[%c60] : memref<98xf32, #tpu.memory_space<smem>>
      %c61 = arith.constant 61 : index
      %87 = memref.load %arg2[%c61] : memref<98xf32, #tpu.memory_space<smem>>
      %c62 = arith.constant 62 : index
      %88 = memref.load %arg2[%c62] : memref<98xf32, #tpu.memory_space<smem>>
      %c63 = arith.constant 63 : index
      %89 = memref.load %arg2[%c63] : memref<98xf32, #tpu.memory_space<smem>>
      %c64 = arith.constant 64 : index
      %90 = memref.load %arg2[%c64] : memref<98xf32, #tpu.memory_space<smem>>
      %c65 = arith.constant 65 : index
      %91 = memref.load %arg2[%c65] : memref<98xf32, #tpu.memory_space<smem>>
      %c66 = arith.constant 66 : index
      %92 = memref.load %arg2[%c66] : memref<98xf32, #tpu.memory_space<smem>>
      %c67 = arith.constant 67 : index
      %93 = memref.load %arg2[%c67] : memref<98xf32, #tpu.memory_space<smem>>
      %c68 = arith.constant 68 : index
      %94 = memref.load %arg2[%c68] : memref<98xf32, #tpu.memory_space<smem>>
      %c69 = arith.constant 69 : index
      %95 = memref.load %arg2[%c69] : memref<98xf32, #tpu.memory_space<smem>>
      %c70 = arith.constant 70 : index
      %96 = memref.load %arg2[%c70] : memref<98xf32, #tpu.memory_space<smem>>
      %c71 = arith.constant 71 : index
      %97 = memref.load %arg2[%c71] : memref<98xf32, #tpu.memory_space<smem>>
      %c72 = arith.constant 72 : index
      %98 = memref.load %arg2[%c72] : memref<98xf32, #tpu.memory_space<smem>>
      %c73 = arith.constant 73 : index
      %99 = memref.load %arg2[%c73] : memref<98xf32, #tpu.memory_space<smem>>
      %c74 = arith.constant 74 : index
      %100 = memref.load %arg2[%c74] : memref<98xf32, #tpu.memory_space<smem>>
      %c75 = arith.constant 75 : index
      %101 = memref.load %arg2[%c75] : memref<98xf32, #tpu.memory_space<smem>>
      %c76 = arith.constant 76 : index
      %102 = memref.load %arg2[%c76] : memref<98xf32, #tpu.memory_space<smem>>
      %c77 = arith.constant 77 : index
      %103 = memref.load %arg2[%c77] : memref<98xf32, #tpu.memory_space<smem>>
      %c78 = arith.constant 78 : index
      %104 = memref.load %arg2[%c78] : memref<98xf32, #tpu.memory_space<smem>>
      %c79 = arith.constant 79 : index
      %105 = memref.load %arg2[%c79] : memref<98xf32, #tpu.memory_space<smem>>
      %c80 = arith.constant 80 : index
      %106 = memref.load %arg2[%c80] : memref<98xf32, #tpu.memory_space<smem>>
      %c81 = arith.constant 81 : index
      %107 = memref.load %arg2[%c81] : memref<98xf32, #tpu.memory_space<smem>>
      %c82 = arith.constant 82 : index
      %108 = memref.load %arg2[%c82] : memref<98xf32, #tpu.memory_space<smem>>
      %c83 = arith.constant 83 : index
      %109 = memref.load %arg2[%c83] : memref<98xf32, #tpu.memory_space<smem>>
      %c84 = arith.constant 84 : index
      %110 = memref.load %arg2[%c84] : memref<98xf32, #tpu.memory_space<smem>>
      %c85 = arith.constant 85 : index
      %111 = memref.load %arg2[%c85] : memref<98xf32, #tpu.memory_space<smem>>
      %c86 = arith.constant 86 : index
      %112 = memref.load %arg2[%c86] : memref<98xf32, #tpu.memory_space<smem>>
      %c87 = arith.constant 87 : index
      %113 = memref.load %arg2[%c87] : memref<98xf32, #tpu.memory_space<smem>>
      %c88 = arith.constant 88 : index
      %114 = memref.load %arg2[%c88] : memref<98xf32, #tpu.memory_space<smem>>
      %c89 = arith.constant 89 : index
      %115 = memref.load %arg2[%c89] : memref<98xf32, #tpu.memory_space<smem>>
      %c90 = arith.constant 90 : index
      %116 = memref.load %arg2[%c90] : memref<98xf32, #tpu.memory_space<smem>>
      %c91 = arith.constant 91 : index
      %117 = memref.load %arg2[%c91] : memref<98xf32, #tpu.memory_space<smem>>
      %c92 = arith.constant 92 : index
      %118 = memref.load %arg2[%c92] : memref<98xf32, #tpu.memory_space<smem>>
      %c93 = arith.constant 93 : index
      %119 = memref.load %arg2[%c93] : memref<98xf32, #tpu.memory_space<smem>>
      %c94 = arith.constant 94 : index
      %120 = memref.load %arg2[%c94] : memref<98xf32, #tpu.memory_space<smem>>
      %c95 = arith.constant 95 : index
      %121 = memref.load %arg2[%c95] : memref<98xf32, #tpu.memory_space<smem>>
      %c96 = arith.constant 96 : index
      %122 = memref.load %arg2[%c96] : memref<98xf32, #tpu.memory_space<smem>>
      %c97 = arith.constant 97 : index
      %123 = memref.load %arg2[%c97] : memref<98xf32, #tpu.memory_space<smem>>
      %c0_26 = arith.constant 0 : index
      %124 = memref.load %arg3[%c0_26] : memref<1xf32, #tpu.memory_space<smem>>
      %125 = vector.broadcast %124 : f32 to vector<1x256xf32>
      %c0_27 = arith.constant 0 : index
      %c0_28 = arith.constant 0 : index
      %126 = vector.load %arg9[%c0_27, %c0_28] : memref<2x512xf32, #tpu.memory_space<vmem>>, vector<1x512xf32>
      %127 = vector.extract_strided_slice %126 {offsets = [0, 77], sizes = [1, 256], strides = [1, 1]} : vector<1x512xf32> to vector<1x256xf32>
      %128 = vector.broadcast %26 : f32 to vector<1x256xf32>
      %129 = arith.mulf %127, %128 : vector<1x256xf32>
      %130 = vector.extract_strided_slice %126 {offsets = [0, 93], sizes = [1, 256], strides = [1, 1]} : vector<1x512xf32> to vector<1x256xf32>
      %131 = vector.broadcast %33 : f32 to vector<1x256xf32>
      %132 = arith.mulf %130, %131 : vector<1x256xf32>
      %133 = arith.addf %129, %132 : vector<1x256xf32>
      %134 = vector.extract_strided_slice %126 {offsets = [0, 109], sizes = [1, 256], strides = [1, 1]} : vector<1x512xf32> to vector<1x256xf32>
      %135 = vector.broadcast %40 : f32 to vector<1x256xf32>
      %136 = arith.mulf %134, %135 : vector<1x256xf32>
      %137 = arith.addf %133, %136 : vector<1x256xf32>
      %138 = vector.extract_strided_slice %126 {offsets = [0, 125], sizes = [1, 256], strides = [1, 1]} : vector<1x512xf32> to vector<1x256xf32>
      %139 = vector.broadcast %47 : f32 to vector<1x256xf32>
      %140 = arith.mulf %138, %139 : vector<1x256xf32>
      %141 = arith.addf %137, %140 : vector<1x256xf32>
      %142 = vector.extract_strided_slice %126 {offsets = [0, 141], sizes = [1, 256], strides = [1, 1]} : vector<1x512xf32> to vector<1x256xf32>
      %143 = vector.broadcast %54 : f32 to vector<1x256xf32>
      %144 = arith.mulf %142, %143 : vector<1x256xf32>
      %145 = arith.addf %141, %144 : vector<1x256xf32>
      %146 = vector.extract_strided_slice %126 {offsets = [0, 157], sizes = [1, 256], strides = [1, 1]} : vector<1x512xf32> to vector<1x256xf32>
      %147 = vector.broadcast %61 : f32 to vector<1x256xf32>
      %148 = arith.mulf %146, %147 : vector<1x256xf32>
      %149 = arith.addf %145, %148 : vector<1x256xf32>
      %150 = vector.extract_strided_slice %126 {offsets = [0, 173], sizes = [1, 256], strides = [1, 1]} : vector<1x512xf32> to vector<1x256xf32>
      %151 = vector.broadcast %68 : f32 to vector<1x256xf32>
      %152 = arith.mulf %150, %151 : vector<1x256xf32>
      %153 = arith.addf %149, %152 : vector<1x256xf32>
      %c0_29 = arith.constant 0 : index
      %c0_30 = arith.constant 0 : index
      %154 = vector.load %arg4[%c0_29, %c0_30] : memref<7x256xf32, #tpu.memory_space<vmem>>, vector<1x256xf32>
      %155 = arith.mulf %153, %154 : vector<1x256xf32>
      %156 = arith.addf %125, %155 : vector<1x256xf32>
      %157 = vector.extract_strided_slice %126 {offsets = [0, 78], sizes = [1, 256], strides = [1, 1]} : vector<1x512xf32> to vector<1x256xf32>
      %158 = vector.broadcast %27 : f32 to vector<1x256xf32>
      %159 = arith.mulf %157, %158 : vector<1x256xf32>
      %160 = vector.extract_strided_slice %126 {offsets = [0, 94], sizes = [1, 256], strides = [1, 1]} : vector<1x512xf32> to vector<1x256xf32>
      %161 = vector.broadcast %34 : f32 to vector<1x256xf32>
      %162 = arith.mulf %160, %161 : vector<1x256xf32>
      %163 = arith.addf %159, %162 : vector<1x256xf32>
      %164 = vector.extract_strided_slice %126 {offsets = [0, 110], sizes = [1, 256], strides = [1, 1]} : vector<1x512xf32> to vector<1x256xf32>
      %165 = vector.broadcast %41 : f32 to vector<1x256xf32>
      %166 = arith.mulf %164, %165 : vector<1x256xf32>
      %167 = arith.addf %163, %166 : vector<1x256xf32>
      %168 = vector.extract_strided_slice %126 {offsets = [0, 126], sizes = [1, 256], strides = [1, 1]} : vector<1x512xf32> to vector<1x256xf32>
      %169 = vector.broadcast %48 : f32 to vector<1x256xf32>
      %170 = arith.mulf %168, %169 : vector<1x256xf32>
      %171 = arith.addf %167, %170 : vector<1x256xf32>
      %172 = vector.extract_strided_slice %126 {offsets = [0, 142], sizes = [1, 256], strides = [1, 1]} : vector<1x512xf32> to vector<1x256xf32>
      %173 = vector.broadcast %55 : f32 to vector<1x256xf32>
      %174 = arith.mulf %172, %173 : vector<1x256xf32>
      %175 = arith.addf %171, %174 : vector<1x256xf32>
      %176 = vector.extract_strided_slice %126 {offsets = [0, 158], sizes = [1, 256], strides = [1, 1]} : vector<1x512xf32> to vector<1x256xf32>
      %177 = vector.broadcast %62 : f32 to vector<1x256xf32>
      %178 = arith.mulf %176, %177 : vector<1x256xf32>
      %179 = arith.addf %175, %178 : vector<1x256xf32>
      %180 = vector.extract_strided_slice %126 {offsets = [0, 174], sizes = [1, 256], strides = [1, 1]} : vector<1x512xf32> to vector<1x256xf32>
      %181 = vector.broadcast %69 : f32 to vector<1x256xf32>
      %182 = arith.mulf %180, %181 : vector<1x256xf32>
      %183 = arith.addf %179, %182 : vector<1x256xf32>
      %c1_31 = arith.constant 1 : index
      %c0_32 = arith.constant 0 : index
      %184 = vector.load %arg4[%c1_31, %c0_32] : memref<7x256xf32, #tpu.memory_space<vmem>>, vector<1x256xf32>
      %185 = arith.mulf %183, %184 : vector<1x256xf32>
      %186 = arith.addf %156, %185 : vector<1x256xf32>
      %187 = vector.extract_strided_slice %126 {offsets = [0, 79], sizes = [1, 256], strides = [1, 1]} : vector<1x512xf32> to vector<1x256xf32>
      %188 = vector.broadcast %28 : f32 to vector<1x256xf32>
      %189 = arith.mulf %187, %188 : vector<1x256xf32>
      %190 = vector.extract_strided_slice %126 {offsets = [0, 95], sizes = [1, 256], strides = [1, 1]} : vector<1x512xf32> to vector<1x256xf32>
      %191 = vector.broadcast %35 : f32 to vector<1x256xf32>
      %192 = arith.mulf %190, %191 : vector<1x256xf32>
      %193 = arith.addf %189, %192 : vector<1x256xf32>
      %194 = vector.extract_strided_slice %126 {offsets = [0, 111], sizes = [1, 256], strides = [1, 1]} : vector<1x512xf32> to vector<1x256xf32>
      %195 = vector.broadcast %42 : f32 to vector<1x256xf32>
      %196 = arith.mulf %194, %195 : vector<1x256xf32>
      %197 = arith.addf %193, %196 : vector<1x256xf32>
      %198 = vector.extract_strided_slice %126 {offsets = [0, 127], sizes = [1, 256], strides = [1, 1]} : vector<1x512xf32> to vector<1x256xf32>
      %199 = vector.broadcast %49 : f32 to vector<1x256xf32>
      %200 = arith.mulf %198, %199 : vector<1x256xf32>
      %201 = arith.addf %197, %200 : vector<1x256xf32>
      %202 = vector.extract_strided_slice %126 {offsets = [0, 143], sizes = [1, 256], strides = [1, 1]} : vector<1x512xf32> to vector<1x256xf32>
      %203 = vector.broadcast %56 : f32 to vector<1x256xf32>
      %204 = arith.mulf %202, %203 : vector<1x256xf32>
      %205 = arith.addf %201, %204 : vector<1x256xf32>
      %206 = vector.extract_strided_slice %126 {offsets = [0, 159], sizes = [1, 256], strides = [1, 1]} : vector<1x512xf32> to vector<1x256xf32>
      %207 = vector.broadcast %63 : f32 to vector<1x256xf32>
      %208 = arith.mulf %206, %207 : vector<1x256xf32>
      %209 = arith.addf %205, %208 : vector<1x256xf32>
      %210 = vector.extract_strided_slice %126 {offsets = [0, 175], sizes = [1, 256], strides = [1, 1]} : vector<1x512xf32> to vector<1x256xf32>
      %211 = vector.broadcast %70 : f32 to vector<1x256xf32>
      %212 = arith.mulf %210, %211 : vector<1x256xf32>
      %213 = arith.addf %209, %212 : vector<1x256xf32>
      %c2_33 = arith.constant 2 : index
      %c0_34 = arith.constant 0 : index
      %214 = vector.load %arg4[%c2_33, %c0_34] : memref<7x256xf32, #tpu.memory_space<vmem>>, vector<1x256xf32>
      %215 = arith.mulf %213, %214 : vector<1x256xf32>
      %216 = arith.addf %186, %215 : vector<1x256xf32>
      %217 = vector.extract_strided_slice %126 {offsets = [0, 80], sizes = [1, 256], strides = [1, 1]} : vector<1x512xf32> to vector<1x256xf32>
      %218 = vector.broadcast %29 : f32 to vector<1x256xf32>
      %219 = arith.mulf %217, %218 : vector<1x256xf32>
      %220 = vector.extract_strided_slice %126 {offsets = [0, 96], sizes = [1, 256], strides = [1, 1]} : vector<1x512xf32> to vector<1x256xf32>
      %221 = vector.broadcast %36 : f32 to vector<1x256xf32>
      %222 = arith.mulf %220, %221 : vector<1x256xf32>
      %223 = arith.addf %219, %222 : vector<1x256xf32>
      %224 = vector.extract_strided_slice %126 {offsets = [0, 112], sizes = [1, 256], strides = [1, 1]} : vector<1x512xf32> to vector<1x256xf32>
      %225 = vector.broadcast %43 : f32 to vector<1x256xf32>
      %226 = arith.mulf %224, %225 : vector<1x256xf32>
      %227 = arith.addf %223, %226 : vector<1x256xf32>
      %228 = vector.extract_strided_slice %126 {offsets = [0, 128], sizes = [1, 256], strides = [1, 1]} : vector<1x512xf32> to vector<1x256xf32>
      %229 = vector.broadcast %50 : f32 to vector<1x256xf32>
      %230 = arith.mulf %228, %229 : vector<1x256xf32>
      %231 = arith.addf %227, %230 : vector<1x256xf32>
      %232 = vector.extract_strided_slice %126 {offsets = [0, 144], sizes = [1, 256], strides = [1, 1]} : vector<1x512xf32> to vector<1x256xf32>
      %233 = vector.broadcast %57 : f32 to vector<1x256xf32>
      %234 = arith.mulf %232, %233 : vector<1x256xf32>
      %235 = arith.addf %231, %234 : vector<1x256xf32>
      %236 = vector.extract_strided_slice %126 {offsets = [0, 160], sizes = [1, 256], strides = [1, 1]} : vector<1x512xf32> to vector<1x256xf32>
      %237 = vector.broadcast %64 : f32 to vector<1x256xf32>
      %238 = arith.mulf %236, %237 : vector<1x256xf32>
      %239 = arith.addf %235, %238 : vector<1x256xf32>
      %240 = vector.extract_strided_slice %126 {offsets = [0, 176], sizes = [1, 256], strides = [1, 1]} : vector<1x512xf32> to vector<1x256xf32>
      %241 = vector.broadcast %71 : f32 to vector<1x256xf32>
      %242 = arith.mulf %240, %241 : vector<1x256xf32>
      %243 = arith.addf %239, %242 : vector<1x256xf32>
      %244 = arith.addf %216, %243 : vector<1x256xf32>
      %245 = vector.extract_strided_slice %126 {offsets = [0, 81], sizes = [1, 256], strides = [1, 1]} : vector<1x512xf32> to vector<1x256xf32>
      %246 = vector.broadcast %30 : f32 to vector<1x256xf32>
      %247 = arith.mulf %245, %246 : vector<1x256xf32>
      %248 = vector.extract_strided_slice %126 {offsets = [0, 97], sizes = [1, 256], strides = [1, 1]} : vector<1x512xf32> to vector<1x256xf32>
      %249 = vector.broadcast %37 : f32 to vector<1x256xf32>
      %250 = arith.mulf %248, %249 : vector<1x256xf32>
      %251 = arith.addf %247, %250 : vector<1x256xf32>
      %252 = vector.extract_strided_slice %126 {offsets = [0, 113], sizes = [1, 256], strides = [1, 1]} : vector<1x512xf32> to vector<1x256xf32>
      %253 = vector.broadcast %44 : f32 to vector<1x256xf32>
      %254 = arith.mulf %252, %253 : vector<1x256xf32>
      %255 = arith.addf %251, %254 : vector<1x256xf32>
      %256 = vector.extract_strided_slice %126 {offsets = [0, 129], sizes = [1, 256], strides = [1, 1]} : vector<1x512xf32> to vector<1x256xf32>
      %257 = vector.broadcast %51 : f32 to vector<1x256xf32>
      %258 = arith.mulf %256, %257 : vector<1x256xf32>
      %259 = arith.addf %255, %258 : vector<1x256xf32>
      %260 = vector.extract_strided_slice %126 {offsets = [0, 145], sizes = [1, 256], strides = [1, 1]} : vector<1x512xf32> to vector<1x256xf32>
      %261 = vector.broadcast %58 : f32 to vector<1x256xf32>
      %262 = arith.mulf %260, %261 : vector<1x256xf32>
      %263 = arith.addf %259, %262 : vector<1x256xf32>
      %264 = vector.extract_strided_slice %126 {offsets = [0, 161], sizes = [1, 256], strides = [1, 1]} : vector<1x512xf32> to vector<1x256xf32>
      %265 = vector.broadcast %65 : f32 to vector<1x256xf32>
      %266 = arith.mulf %264, %265 : vector<1x256xf32>
      %267 = arith.addf %263, %266 : vector<1x256xf32>
      %268 = vector.extract_strided_slice %126 {offsets = [0, 177], sizes = [1, 256], strides = [1, 1]} : vector<1x512xf32> to vector<1x256xf32>
      %269 = vector.broadcast %72 : f32 to vector<1x256xf32>
      %270 = arith.mulf %268, %269 : vector<1x256xf32>
      %271 = arith.addf %267, %270 : vector<1x256xf32>
      %c4_35 = arith.constant 4 : index
      %c0_36 = arith.constant 0 : index
      %272 = vector.load %arg4[%c4_35, %c0_36] : memref<7x256xf32, #tpu.memory_space<vmem>>, vector<1x256xf32>
      %273 = arith.mulf %271, %272 : vector<1x256xf32>
      %274 = arith.addf %244, %273 : vector<1x256xf32>
      %275 = vector.extract_strided_slice %126 {offsets = [0, 82], sizes = [1, 256], strides = [1, 1]} : vector<1x512xf32> to vector<1x256xf32>
      %276 = vector.broadcast %31 : f32 to vector<1x256xf32>
      %277 = arith.mulf %275, %276 : vector<1x256xf32>
      %278 = vector.extract_strided_slice %126 {offsets = [0, 98], sizes = [1, 256], strides = [1, 1]} : vector<1x512xf32> to vector<1x256xf32>
      %279 = vector.broadcast %38 : f32 to vector<1x256xf32>
      %280 = arith.mulf %278, %279 : vector<1x256xf32>
      %281 = arith.addf %277, %280 : vector<1x256xf32>
      %282 = vector.extract_strided_slice %126 {offsets = [0, 114], sizes = [1, 256], strides = [1, 1]} : vector<1x512xf32> to vector<1x256xf32>
      %283 = vector.broadcast %45 : f32 to vector<1x256xf32>
      %284 = arith.mulf %282, %283 : vector<1x256xf32>
      %285 = arith.addf %281, %284 : vector<1x256xf32>
      %286 = vector.extract_strided_slice %126 {offsets = [0, 130], sizes = [1, 256], strides = [1, 1]} : vector<1x512xf32> to vector<1x256xf32>
      %287 = vector.broadcast %52 : f32 to vector<1x256xf32>
      %288 = arith.mulf %286, %287 : vector<1x256xf32>
      %289 = arith.addf %285, %288 : vector<1x256xf32>
      %290 = vector.extract_strided_slice %126 {offsets = [0, 146], sizes = [1, 256], strides = [1, 1]} : vector<1x512xf32> to vector<1x256xf32>
      %291 = vector.broadcast %59 : f32 to vector<1x256xf32>
      %292 = arith.mulf %290, %291 : vector<1x256xf32>
      %293 = arith.addf %289, %292 : vector<1x256xf32>
      %294 = vector.extract_strided_slice %126 {offsets = [0, 162], sizes = [1, 256], strides = [1, 1]} : vector<1x512xf32> to vector<1x256xf32>
      %295 = vector.broadcast %66 : f32 to vector<1x256xf32>
      %296 = arith.mulf %294, %295 : vector<1x256xf32>
      %297 = arith.addf %293, %296 : vector<1x256xf32>
      %298 = vector.extract_strided_slice %126 {offsets = [0, 178], sizes = [1, 256], strides = [1, 1]} : vector<1x512xf32> to vector<1x256xf32>
      %299 = vector.broadcast %73 : f32 to vector<1x256xf32>
      %300 = arith.mulf %298, %299 : vector<1x256xf32>
      %301 = arith.addf %297, %300 : vector<1x256xf32>
      %c5_37 = arith.constant 5 : index
      %c0_38 = arith.constant 0 : index
      %302 = vector.load %arg4[%c5_37, %c0_38] : memref<7x256xf32, #tpu.memory_space<vmem>>, vector<1x256xf32>
      %303 = arith.mulf %301, %302 : vector<1x256xf32>
      %304 = arith.addf %274, %303 : vector<1x256xf32>
      %305 = vector.extract_strided_slice %126 {offsets = [0, 83], sizes = [1, 256], strides = [1, 1]} : vector<1x512xf32> to vector<1x256xf32>
      %306 = vector.broadcast %32 : f32 to vector<1x256xf32>
      %307 = arith.mulf %305, %306 : vector<1x256xf32>
      %308 = vector.extract_strided_slice %126 {offsets = [0, 99], sizes = [1, 256], strides = [1, 1]} : vector<1x512xf32> to vector<1x256xf32>
      %309 = vector.broadcast %39 : f32 to vector<1x256xf32>
      %310 = arith.mulf %308, %309 : vector<1x256xf32>
      %311 = arith.addf %307, %310 : vector<1x256xf32>
      %312 = vector.extract_strided_slice %126 {offsets = [0, 115], sizes = [1, 256], strides = [1, 1]} : vector<1x512xf32> to vector<1x256xf32>
      %313 = vector.broadcast %46 : f32 to vector<1x256xf32>
      %314 = arith.mulf %312, %313 : vector<1x256xf32>
      %315 = arith.addf %311, %314 : vector<1x256xf32>
      %316 = vector.extract_strided_slice %126 {offsets = [0, 131], sizes = [1, 256], strides = [1, 1]} : vector<1x512xf32> to vector<1x256xf32>
      %317 = vector.broadcast %53 : f32 to vector<1x256xf32>
      %318 = arith.mulf %316, %317 : vector<1x256xf32>
      %319 = arith.addf %315, %318 : vector<1x256xf32>
      %320 = vector.extract_strided_slice %126 {offsets = [0, 147], sizes = [1, 256], strides = [1, 1]} : vector<1x512xf32> to vector<1x256xf32>
      %321 = vector.broadcast %60 : f32 to vector<1x256xf32>
      %322 = arith.mulf %320, %321 : vector<1x256xf32>
      %323 = arith.addf %319, %322 : vector<1x256xf32>
      %324 = vector.extract_strided_slice %126 {offsets = [0, 163], sizes = [1, 256], strides = [1, 1]} : vector<1x512xf32> to vector<1x256xf32>
      %325 = vector.broadcast %67 : f32 to vector<1x256xf32>
      %326 = arith.mulf %324, %325 : vector<1x256xf32>
      %327 = arith.addf %323, %326 : vector<1x256xf32>
      %328 = vector.extract_strided_slice %126 {offsets = [0, 179], sizes = [1, 256], strides = [1, 1]} : vector<1x512xf32> to vector<1x256xf32>
      %329 = vector.broadcast %74 : f32 to vector<1x256xf32>
      %330 = arith.mulf %328, %329 : vector<1x256xf32>
      %331 = arith.addf %327, %330 : vector<1x256xf32>
      %c6_39 = arith.constant 6 : index
      %c0_40 = arith.constant 0 : index
      %332 = vector.load %arg4[%c6_39, %c0_40] : memref<7x256xf32, #tpu.memory_space<vmem>>, vector<1x256xf32>
      %333 = arith.mulf %331, %332 : vector<1x256xf32>
      %334 = arith.addf %304, %333 : vector<1x256xf32>
      %c1_41 = arith.constant 1 : index
      %c0_42 = arith.constant 0 : index
      %335 = vector.load %arg9[%c1_41, %c0_42] : memref<2x512xf32, #tpu.memory_space<vmem>>, vector<1x512xf32>
      %336 = vector.extract_strided_slice %335 {offsets = [0, 77], sizes = [1, 256], strides = [1, 1]} : vector<1x512xf32> to vector<1x256xf32>
      %337 = vector.broadcast %75 : f32 to vector<1x256xf32>
      %338 = arith.mulf %336, %337 : vector<1x256xf32>
      %339 = vector.extract_strided_slice %335 {offsets = [0, 93], sizes = [1, 256], strides = [1, 1]} : vector<1x512xf32> to vector<1x256xf32>
      %340 = vector.broadcast %82 : f32 to vector<1x256xf32>
      %341 = arith.mulf %339, %340 : vector<1x256xf32>
      %342 = arith.addf %338, %341 : vector<1x256xf32>
      %343 = vector.extract_strided_slice %335 {offsets = [0, 109], sizes = [1, 256], strides = [1, 1]} : vector<1x512xf32> to vector<1x256xf32>
      %344 = vector.broadcast %89 : f32 to vector<1x256xf32>
      %345 = arith.mulf %343, %344 : vector<1x256xf32>
      %346 = arith.addf %342, %345 : vector<1x256xf32>
      %347 = vector.extract_strided_slice %335 {offsets = [0, 125], sizes = [1, 256], strides = [1, 1]} : vector<1x512xf32> to vector<1x256xf32>
      %348 = vector.broadcast %96 : f32 to vector<1x256xf32>
      %349 = arith.mulf %347, %348 : vector<1x256xf32>
      %350 = arith.addf %346, %349 : vector<1x256xf32>
      %351 = vector.extract_strided_slice %335 {offsets = [0, 141], sizes = [1, 256], strides = [1, 1]} : vector<1x512xf32> to vector<1x256xf32>
      %352 = vector.broadcast %103 : f32 to vector<1x256xf32>
      %353 = arith.mulf %351, %352 : vector<1x256xf32>
      %354 = arith.addf %350, %353 : vector<1x256xf32>
      %355 = vector.extract_strided_slice %335 {offsets = [0, 157], sizes = [1, 256], strides = [1, 1]} : vector<1x512xf32> to vector<1x256xf32>
      %356 = vector.broadcast %110 : f32 to vector<1x256xf32>
      %357 = arith.mulf %355, %356 : vector<1x256xf32>
      %358 = arith.addf %354, %357 : vector<1x256xf32>
      %359 = vector.extract_strided_slice %335 {offsets = [0, 173], sizes = [1, 256], strides = [1, 1]} : vector<1x512xf32> to vector<1x256xf32>
      %360 = vector.broadcast %117 : f32 to vector<1x256xf32>
      %361 = arith.mulf %359, %360 : vector<1x256xf32>
      %362 = arith.addf %358, %361 : vector<1x256xf32>
      %c0_43 = arith.constant 0 : index
      %c0_44 = arith.constant 0 : index
      %363 = vector.load %arg4[%c0_43, %c0_44] : memref<7x256xf32, #tpu.memory_space<vmem>>, vector<1x256xf32>
      %364 = arith.mulf %362, %363 : vector<1x256xf32>
      %365 = arith.addf %334, %364 : vector<1x256xf32>
      %366 = vector.extract_strided_slice %335 {offsets = [0, 78], sizes = [1, 256], strides = [1, 1]} : vector<1x512xf32> to vector<1x256xf32>
      %367 = vector.broadcast %76 : f32 to vector<1x256xf32>
      %368 = arith.mulf %366, %367 : vector<1x256xf32>
      %369 = vector.extract_strided_slice %335 {offsets = [0, 94], sizes = [1, 256], strides = [1, 1]} : vector<1x512xf32> to vector<1x256xf32>
      %370 = vector.broadcast %83 : f32 to vector<1x256xf32>
      %371 = arith.mulf %369, %370 : vector<1x256xf32>
      %372 = arith.addf %368, %371 : vector<1x256xf32>
      %373 = vector.extract_strided_slice %335 {offsets = [0, 110], sizes = [1, 256], strides = [1, 1]} : vector<1x512xf32> to vector<1x256xf32>
      %374 = vector.broadcast %90 : f32 to vector<1x256xf32>
      %375 = arith.mulf %373, %374 : vector<1x256xf32>
      %376 = arith.addf %372, %375 : vector<1x256xf32>
      %377 = vector.extract_strided_slice %335 {offsets = [0, 126], sizes = [1, 256], strides = [1, 1]} : vector<1x512xf32> to vector<1x256xf32>
      %378 = vector.broadcast %97 : f32 to vector<1x256xf32>
      %379 = arith.mulf %377, %378 : vector<1x256xf32>
      %380 = arith.addf %376, %379 : vector<1x256xf32>
      %381 = vector.extract_strided_slice %335 {offsets = [0, 142], sizes = [1, 256], strides = [1, 1]} : vector<1x512xf32> to vector<1x256xf32>
      %382 = vector.broadcast %104 : f32 to vector<1x256xf32>
      %383 = arith.mulf %381, %382 : vector<1x256xf32>
      %384 = arith.addf %380, %383 : vector<1x256xf32>
      %385 = vector.extract_strided_slice %335 {offsets = [0, 158], sizes = [1, 256], strides = [1, 1]} : vector<1x512xf32> to vector<1x256xf32>
      %386 = vector.broadcast %111 : f32 to vector<1x256xf32>
      %387 = arith.mulf %385, %386 : vector<1x256xf32>
      %388 = arith.addf %384, %387 : vector<1x256xf32>
      %389 = vector.extract_strided_slice %335 {offsets = [0, 174], sizes = [1, 256], strides = [1, 1]} : vector<1x512xf32> to vector<1x256xf32>
      %390 = vector.broadcast %118 : f32 to vector<1x256xf32>
      %391 = arith.mulf %389, %390 : vector<1x256xf32>
      %392 = arith.addf %388, %391 : vector<1x256xf32>
      %c1_45 = arith.constant 1 : index
      %c0_46 = arith.constant 0 : index
      %393 = vector.load %arg4[%c1_45, %c0_46] : memref<7x256xf32, #tpu.memory_space<vmem>>, vector<1x256xf32>
      %394 = arith.mulf %392, %393 : vector<1x256xf32>
      %395 = arith.addf %365, %394 : vector<1x256xf32>
      %396 = vector.extract_strided_slice %335 {offsets = [0, 79], sizes = [1, 256], strides = [1, 1]} : vector<1x512xf32> to vector<1x256xf32>
      %397 = vector.broadcast %77 : f32 to vector<1x256xf32>
      %398 = arith.mulf %396, %397 : vector<1x256xf32>
      %399 = vector.extract_strided_slice %335 {offsets = [0, 95], sizes = [1, 256], strides = [1, 1]} : vector<1x512xf32> to vector<1x256xf32>
      %400 = vector.broadcast %84 : f32 to vector<1x256xf32>
      %401 = arith.mulf %399, %400 : vector<1x256xf32>
      %402 = arith.addf %398, %401 : vector<1x256xf32>
      %403 = vector.extract_strided_slice %335 {offsets = [0, 111], sizes = [1, 256], strides = [1, 1]} : vector<1x512xf32> to vector<1x256xf32>
      %404 = vector.broadcast %91 : f32 to vector<1x256xf32>
      %405 = arith.mulf %403, %404 : vector<1x256xf32>
      %406 = arith.addf %402, %405 : vector<1x256xf32>
      %407 = vector.extract_strided_slice %335 {offsets = [0, 127], sizes = [1, 256], strides = [1, 1]} : vector<1x512xf32> to vector<1x256xf32>
      %408 = vector.broadcast %98 : f32 to vector<1x256xf32>
      %409 = arith.mulf %407, %408 : vector<1x256xf32>
      %410 = arith.addf %406, %409 : vector<1x256xf32>
      %411 = vector.extract_strided_slice %335 {offsets = [0, 143], sizes = [1, 256], strides = [1, 1]} : vector<1x512xf32> to vector<1x256xf32>
      %412 = vector.broadcast %105 : f32 to vector<1x256xf32>
      %413 = arith.mulf %411, %412 : vector<1x256xf32>
      %414 = arith.addf %410, %413 : vector<1x256xf32>
      %415 = vector.extract_strided_slice %335 {offsets = [0, 159], sizes = [1, 256], strides = [1, 1]} : vector<1x512xf32> to vector<1x256xf32>
      %416 = vector.broadcast %112 : f32 to vector<1x256xf32>
      %417 = arith.mulf %415, %416 : vector<1x256xf32>
      %418 = arith.addf %414, %417 : vector<1x256xf32>
      %419 = vector.extract_strided_slice %335 {offsets = [0, 175], sizes = [1, 256], strides = [1, 1]} : vector<1x512xf32> to vector<1x256xf32>
      %420 = vector.broadcast %119 : f32 to vector<1x256xf32>
      %421 = arith.mulf %419, %420 : vector<1x256xf32>
      %422 = arith.addf %418, %421 : vector<1x256xf32>
      %c2_47 = arith.constant 2 : index
      %c0_48 = arith.constant 0 : index
      %423 = vector.load %arg4[%c2_47, %c0_48] : memref<7x256xf32, #tpu.memory_space<vmem>>, vector<1x256xf32>
      %424 = arith.mulf %422, %423 : vector<1x256xf32>
      %425 = arith.addf %395, %424 : vector<1x256xf32>
      %426 = vector.extract_strided_slice %335 {offsets = [0, 80], sizes = [1, 256], strides = [1, 1]} : vector<1x512xf32> to vector<1x256xf32>
      %427 = vector.broadcast %78 : f32 to vector<1x256xf32>
      %428 = arith.mulf %426, %427 : vector<1x256xf32>
      %429 = vector.extract_strided_slice %335 {offsets = [0, 96], sizes = [1, 256], strides = [1, 1]} : vector<1x512xf32> to vector<1x256xf32>
      %430 = vector.broadcast %85 : f32 to vector<1x256xf32>
      %431 = arith.mulf %429, %430 : vector<1x256xf32>
      %432 = arith.addf %428, %431 : vector<1x256xf32>
      %433 = vector.extract_strided_slice %335 {offsets = [0, 112], sizes = [1, 256], strides = [1, 1]} : vector<1x512xf32> to vector<1x256xf32>
      %434 = vector.broadcast %92 : f32 to vector<1x256xf32>
      %435 = arith.mulf %433, %434 : vector<1x256xf32>
      %436 = arith.addf %432, %435 : vector<1x256xf32>
      %437 = vector.extract_strided_slice %335 {offsets = [0, 128], sizes = [1, 256], strides = [1, 1]} : vector<1x512xf32> to vector<1x256xf32>
      %438 = vector.broadcast %99 : f32 to vector<1x256xf32>
      %439 = arith.mulf %437, %438 : vector<1x256xf32>
      %440 = arith.addf %436, %439 : vector<1x256xf32>
      %441 = vector.extract_strided_slice %335 {offsets = [0, 144], sizes = [1, 256], strides = [1, 1]} : vector<1x512xf32> to vector<1x256xf32>
      %442 = vector.broadcast %106 : f32 to vector<1x256xf32>
      %443 = arith.mulf %441, %442 : vector<1x256xf32>
      %444 = arith.addf %440, %443 : vector<1x256xf32>
      %445 = vector.extract_strided_slice %335 {offsets = [0, 160], sizes = [1, 256], strides = [1, 1]} : vector<1x512xf32> to vector<1x256xf32>
      %446 = vector.broadcast %113 : f32 to vector<1x256xf32>
      %447 = arith.mulf %445, %446 : vector<1x256xf32>
      %448 = arith.addf %444, %447 : vector<1x256xf32>
      %449 = vector.extract_strided_slice %335 {offsets = [0, 176], sizes = [1, 256], strides = [1, 1]} : vector<1x512xf32> to vector<1x256xf32>
      %450 = vector.broadcast %120 : f32 to vector<1x256xf32>
      %451 = arith.mulf %449, %450 : vector<1x256xf32>
      %452 = arith.addf %448, %451 : vector<1x256xf32>
      %453 = arith.addf %425, %452 : vector<1x256xf32>
      %454 = vector.extract_strided_slice %335 {offsets = [0, 81], sizes = [1, 256], strides = [1, 1]} : vector<1x512xf32> to vector<1x256xf32>
      %455 = vector.broadcast %79 : f32 to vector<1x256xf32>
      %456 = arith.mulf %454, %455 : vector<1x256xf32>
      %457 = vector.extract_strided_slice %335 {offsets = [0, 97], sizes = [1, 256], strides = [1, 1]} : vector<1x512xf32> to vector<1x256xf32>
      %458 = vector.broadcast %86 : f32 to vector<1x256xf32>
      %459 = arith.mulf %457, %458 : vector<1x256xf32>
      %460 = arith.addf %456, %459 : vector<1x256xf32>
      %461 = vector.extract_strided_slice %335 {offsets = [0, 113], sizes = [1, 256], strides = [1, 1]} : vector<1x512xf32> to vector<1x256xf32>
      %462 = vector.broadcast %93 : f32 to vector<1x256xf32>
      %463 = arith.mulf %461, %462 : vector<1x256xf32>
      %464 = arith.addf %460, %463 : vector<1x256xf32>
      %465 = vector.extract_strided_slice %335 {offsets = [0, 129], sizes = [1, 256], strides = [1, 1]} : vector<1x512xf32> to vector<1x256xf32>
      %466 = vector.broadcast %100 : f32 to vector<1x256xf32>
      %467 = arith.mulf %465, %466 : vector<1x256xf32>
      %468 = arith.addf %464, %467 : vector<1x256xf32>
      %469 = vector.extract_strided_slice %335 {offsets = [0, 145], sizes = [1, 256], strides = [1, 1]} : vector<1x512xf32> to vector<1x256xf32>
      %470 = vector.broadcast %107 : f32 to vector<1x256xf32>
      %471 = arith.mulf %469, %470 : vector<1x256xf32>
      %472 = arith.addf %468, %471 : vector<1x256xf32>
      %473 = vector.extract_strided_slice %335 {offsets = [0, 161], sizes = [1, 256], strides = [1, 1]} : vector<1x512xf32> to vector<1x256xf32>
      %474 = vector.broadcast %114 : f32 to vector<1x256xf32>
      %475 = arith.mulf %473, %474 : vector<1x256xf32>
      %476 = arith.addf %472, %475 : vector<1x256xf32>
      %477 = vector.extract_strided_slice %335 {offsets = [0, 177], sizes = [1, 256], strides = [1, 1]} : vector<1x512xf32> to vector<1x256xf32>
      %478 = vector.broadcast %121 : f32 to vector<1x256xf32>
      %479 = arith.mulf %477, %478 : vector<1x256xf32>
      %480 = arith.addf %476, %479 : vector<1x256xf32>
      %c4_49 = arith.constant 4 : index
      %c0_50 = arith.constant 0 : index
      %481 = vector.load %arg4[%c4_49, %c0_50] : memref<7x256xf32, #tpu.memory_space<vmem>>, vector<1x256xf32>
      %482 = arith.mulf %480, %481 : vector<1x256xf32>
      %483 = arith.addf %453, %482 : vector<1x256xf32>
      %484 = vector.extract_strided_slice %335 {offsets = [0, 82], sizes = [1, 256], strides = [1, 1]} : vector<1x512xf32> to vector<1x256xf32>
      %485 = vector.broadcast %80 : f32 to vector<1x256xf32>
      %486 = arith.mulf %484, %485 : vector<1x256xf32>
      %487 = vector.extract_strided_slice %335 {offsets = [0, 98], sizes = [1, 256], strides = [1, 1]} : vector<1x512xf32> to vector<1x256xf32>
      %488 = vector.broadcast %87 : f32 to vector<1x256xf32>
      %489 = arith.mulf %487, %488 : vector<1x256xf32>
      %490 = arith.addf %486, %489 : vector<1x256xf32>
      %491 = vector.extract_strided_slice %335 {offsets = [0, 114], sizes = [1, 256], strides = [1, 1]} : vector<1x512xf32> to vector<1x256xf32>
      %492 = vector.broadcast %94 : f32 to vector<1x256xf32>
      %493 = arith.mulf %491, %492 : vector<1x256xf32>
      %494 = arith.addf %490, %493 : vector<1x256xf32>
      %495 = vector.extract_strided_slice %335 {offsets = [0, 130], sizes = [1, 256], strides = [1, 1]} : vector<1x512xf32> to vector<1x256xf32>
      %496 = vector.broadcast %101 : f32 to vector<1x256xf32>
      %497 = arith.mulf %495, %496 : vector<1x256xf32>
      %498 = arith.addf %494, %497 : vector<1x256xf32>
      %499 = vector.extract_strided_slice %335 {offsets = [0, 146], sizes = [1, 256], strides = [1, 1]} : vector<1x512xf32> to vector<1x256xf32>
      %500 = vector.broadcast %108 : f32 to vector<1x256xf32>
      %501 = arith.mulf %499, %500 : vector<1x256xf32>
      %502 = arith.addf %498, %501 : vector<1x256xf32>
      %503 = vector.extract_strided_slice %335 {offsets = [0, 162], sizes = [1, 256], strides = [1, 1]} : vector<1x512xf32> to vector<1x256xf32>
      %504 = vector.broadcast %115 : f32 to vector<1x256xf32>
      %505 = arith.mulf %503, %504 : vector<1x256xf32>
      %506 = arith.addf %502, %505 : vector<1x256xf32>
      %507 = vector.extract_strided_slice %335 {offsets = [0, 178], sizes = [1, 256], strides = [1, 1]} : vector<1x512xf32> to vector<1x256xf32>
      %508 = vector.broadcast %122 : f32 to vector<1x256xf32>
      %509 = arith.mulf %507, %508 : vector<1x256xf32>
      %510 = arith.addf %506, %509 : vector<1x256xf32>
      %c5_51 = arith.constant 5 : index
      %c0_52 = arith.constant 0 : index
      %511 = vector.load %arg4[%c5_51, %c0_52] : memref<7x256xf32, #tpu.memory_space<vmem>>, vector<1x256xf32>
      %512 = arith.mulf %510, %511 : vector<1x256xf32>
      %513 = arith.addf %483, %512 : vector<1x256xf32>
      %514 = vector.extract_strided_slice %335 {offsets = [0, 83], sizes = [1, 256], strides = [1, 1]} : vector<1x512xf32> to vector<1x256xf32>
      %515 = vector.broadcast %81 : f32 to vector<1x256xf32>
      %516 = arith.mulf %514, %515 : vector<1x256xf32>
      %517 = vector.extract_strided_slice %335 {offsets = [0, 99], sizes = [1, 256], strides = [1, 1]} : vector<1x512xf32> to vector<1x256xf32>
      %518 = vector.broadcast %88 : f32 to vector<1x256xf32>
      %519 = arith.mulf %517, %518 : vector<1x256xf32>
      %520 = arith.addf %516, %519 : vector<1x256xf32>
      %521 = vector.extract_strided_slice %335 {offsets = [0, 115], sizes = [1, 256], strides = [1, 1]} : vector<1x512xf32> to vector<1x256xf32>
      %522 = vector.broadcast %95 : f32 to vector<1x256xf32>
      %523 = arith.mulf %521, %522 : vector<1x256xf32>
      %524 = arith.addf %520, %523 : vector<1x256xf32>
      %525 = vector.extract_strided_slice %335 {offsets = [0, 131], sizes = [1, 256], strides = [1, 1]} : vector<1x512xf32> to vector<1x256xf32>
      %526 = vector.broadcast %102 : f32 to vector<1x256xf32>
      %527 = arith.mulf %525, %526 : vector<1x256xf32>
      %528 = arith.addf %524, %527 : vector<1x256xf32>
      %529 = vector.extract_strided_slice %335 {offsets = [0, 147], sizes = [1, 256], strides = [1, 1]} : vector<1x512xf32> to vector<1x256xf32>
      %530 = vector.broadcast %109 : f32 to vector<1x256xf32>
      %531 = arith.mulf %529, %530 : vector<1x256xf32>
      %532 = arith.addf %528, %531 : vector<1x256xf32>
      %533 = vector.extract_strided_slice %335 {offsets = [0, 163], sizes = [1, 256], strides = [1, 1]} : vector<1x512xf32> to vector<1x256xf32>
      %534 = vector.broadcast %116 : f32 to vector<1x256xf32>
      %535 = arith.mulf %533, %534 : vector<1x256xf32>
      %536 = arith.addf %532, %535 : vector<1x256xf32>
      %537 = vector.extract_strided_slice %335 {offsets = [0, 179], sizes = [1, 256], strides = [1, 1]} : vector<1x512xf32> to vector<1x256xf32>
      %538 = vector.broadcast %123 : f32 to vector<1x256xf32>
      %539 = arith.mulf %537, %538 : vector<1x256xf32>
      %540 = arith.addf %536, %539 : vector<1x256xf32>
      %c6_53 = arith.constant 6 : index
      %c0_54 = arith.constant 0 : index
      %541 = vector.load %arg4[%c6_53, %c0_54] : memref<7x256xf32, #tpu.memory_space<vmem>>, vector<1x256xf32>
      %542 = arith.mulf %540, %541 : vector<1x256xf32>
      %543 = arith.addf %513, %542 : vector<1x256xf32>
      %544 = arith.negf %543 : vector<1x256xf32>
      %545 = math.exp %544 : vector<1x256xf32>
      %cst_55 = arith.constant 1.000000e+00 : f32
      %546 = vector.broadcast %cst_55 : f32 to vector<1x256xf32>
      %547 = arith.addf %546, %545 : vector<1x256xf32>
      %548 = arith.divf %546, %547 : vector<1x256xf32>
      %c0_56 = arith.constant 0 : index
      %c0_57 = arith.constant 0 : index
      %c0_58 = arith.constant 0 : index
      %549 = vector.load %arg6[%c0_56, %c0_57, %c0_58] : memref<1x1x256xf32, #tpu.memory_space<vmem>>, vector<1x1x256xf32>
      %550 = vector.shape_cast %549 : vector<1x1x256xf32> to vector<1x256xf32>
      %551 = vector.shape_cast %548 : vector<1x256xf32> to vector<1x1x256xf32>
      tpu.vector_store %arg6[%c0_56, %c0_57, %c0_58], %551 {strides = array<i32>} : memref<1x1x256xf32, #tpu.memory_space<vmem>>, vector<1x1x256xf32>,
    } else {
    }
    return
  }
  func.func @transform_0(%arg0: i32, %arg1: i32) -> i32 {
    %c0_i32 = arith.constant 0 : i32
    %c0_i32_0 = arith.constant 0 : i32
    return %c0_i32 : i32
  }
  func.func @transform_1(%arg0: i32, %arg1: i32) -> i32 {
    %c0_i32 = arith.constant 0 : i32
    %c0_i32_0 = arith.constant 0 : i32
    return %c0_i32 : i32
  }
  func.func @transform_2(%arg0: i32, %arg1: i32) -> (i32, i32) {
    %c0_i32 = arith.constant 0 : i32
    %c0_i32_0 = arith.constant 0 : i32
    %c0_i32_1 = arith.constant 0 : i32
    return %c0_i32, %c0_i32_0 : i32, i32
  }
  func.func @transform_3(%arg0: i32, %arg1: i32) -> (i32, i32, i32) {
    %c0_i32 = arith.constant 0 : i32
    %c0_i32_0 = arith.constant 0 : i32
    return %arg0, %arg1, %c0_i32 : i32, i32, i32
  }
  func.func @transform_4(%arg0: i32, %arg1: i32) -> (i32, i32, i32) {
    %c0_i32 = arith.constant 0 : i32
    %c0_i32_0 = arith.constant 0 : i32
    %c0_i32_1 = arith.constant 0 : i32
    return %arg0, %c0_i32, %c0_i32_0 : i32, i32, i32
  }
}

</mosaic_0001>

<llo_original>
// kernel: tpu_custom_call.1
$region0: #{tpu_custom_call.1}
  #allocation0 [shape = 'u32[]', space=smem, size = 0x4, offset = 0x4, fixed_abs, tag = 'smem constant byte address 0x4 - core index']
  #allocation1 [shape = 'u32[144,128]{1,0:T(1,128)}', space=vmem, size = 0x12000, scoped, tag = 'internal scratch']
  #allocation2 [shape = 'f32[1,256]{1,0:T(1,128)}', space=vmem, size = 0x400, scoped, tag = 'scratch operand']
  #allocation3 [shape = 'f32[1,256]{1,0:T(1,128)}', space=vmem, size = 0x400, scoped, tag = 'scratch operand']
  #allocation4 [shape = 'f32[2,512]{1,0:T(2,128)}', space=vmem, size = 0x1000, scoped, tag = 'scratch operand']
  #allocation5 [shape = 'f32[1]{0:T(128)S(6)}', space=smem, size = 0x200, scoped, tag = 'scoped memory for tpu_custom_call.1']
  %s0 = inlined_call_operand.vmem [shape: f32[98], index: 0, kind: input, shape index: {}]
  %s1 = inlined_call_operand.<no memory space> [shape: f32[1], index: 1, kind: input, shape index: {}]
  %s2 = inlined_call_operand.hbm [shape: f32[7,256], index: 2, kind: input, shape index: {}]
  %s3 = inlined_call_operand.hbm [shape: f32[2,4,256], index: 3, kind: input, shape index: {}]
  %s4 = inlined_call_operand.hbm [shape: f32[2,1,256], index: 4, kind: output, shape index: {}]
  %s5 = sld [smem:[#allocation0]]
  $region69: #{tpu_custom_call.1} parent=0
    _
  %s7 = ssub.s32 1, %s5
  %s8 = scalar_select 0, %s7, %s5
  %9 = sst [smem:[#allocation5]] %s1
  $region1: #{tpu_custom_call.1} parent=0
    #allocation6 [shape = 'u8[512]{0}', space=smem, size = 0x200, scoped, tag = 'input window, operand 0, single buffered']
    #allocation7 [shape = 's32[2]{0}', space=sflag, size = 0x8, scoped, tag = 'scoped memory for tpu_custom_call.1']
    #allocation8 [shape = 's32[2]{0}', space=sflag, size = 0x8, scoped, tag = 'scoped memory for tpu_custom_call.1']
    #allocation9 [shape = 's32[2]{0}', space=sflag, size = 0x8, scoped, tag = 'scoped memory for tpu_custom_call.1']
    #allocation10 [shape = 'u8[8192]{0}', space=vmem, size = 0x2000, scoped, tag = 'input window, operand 2, single buffered']
    #allocation11 [shape = 'u8[8192]{0}', space=vmem, size = 0x2000, scoped, tag = 'input window, operand 3']
    #allocation12 [shape = 's32[2]{0}', space=sflag, size = 0x8, scoped, tag = 'scoped memory for tpu_custom_call.1']
    #allocation13 [shape = 'u8[2048]{0}', space=vmem, size = 0x800, scoped, tag = 'output window, operand 0']
    %10 = vsyncpa [#allocation9], 0
    %11 = vsyncpa [#allocation7], 0
    %12 = vsyncpa [#allocation12], 0
    %s13 = scalar_lea.sflag [#allocation12], 1
    %14 = vsyncpa %s13, 0
    %15 = vsyncpa [#allocation8], 0
    %s16 = scalar_lea.sflag [#allocation8], 1
    %17 = vsyncpa %s16, 0
    loop: start=0, step=1, limit=4
    $region2: #{tpu_custom_call.1} parent=1 // loop_pre_header
      _
    $region3: #{tpu_custom_call.1} parent=1 // loop_header
      %s19 = sphi 0, %s23
      %p20 = scmp.ge.s32.totalorder %s19, 4
      %s26 = sphi 0, %s38
      %s27 = sphi 0, %s34
      %s28 = sphi 0, %s26
      %s29 = sphi 0, %s27
      %s30 = sphi 0, %s28
      %s31 = sphi 0, %s29
      %s39 = sphi 0, %s39
      %s41 = sphi 0, %s39
      %s42 = sphi 0, %s41
      %s56 = sphi 0, %s42
      %s60 = sphi 0, %s60
      %s62 = sphi 0, %s60
      %s63 = sphi 0, %s62
      %s77 = sphi 0, %s63
      %s81 = sphi 0, %s81
      %s83 = sphi 0, %s81
      %s84 = sphi 0, %s83
      %s98 = sphi 0, %s84
      %s106 = sphi 0, %s108
      %s109 = sphi 0, %s106
      %s110 = sphi 0, %s109
      %s126 = sphi 0, %s110
      %s132 = sphi 0, %s134
      %s135 = sphi 0, %s132
      %s136 = sphi 0, %s135
      %s152 = sphi 0, %s136
    $region4: #{tpu_custom_call.1} parent=1 // loop_header_branch
      %22 = sbr.rel (%p20) target = $region8
    $region5: #{tpu_custom_call.1} parent=1 // loop_body
      %s24 = ssub.s32 %s19, 1
      %s25 = ssub.s32 %s19, 2
      %s32 = sadd.s32 1, %s27
      %p33 = scmp.ge.s32.totalorder %s32, 1
      %s34 = scalar_select %p33, 0, %s32
      %s35 = sadd.s32 1, %s26
      %s36 = scalar_select %p33, %s35, %s26
      %p37 = scmp.ge.s32.totalorder %s36, 2
      %s38 = scalar_select %p37, 0, %s36
      %s40 = sadd.s32 %s39, 1
      %p43 = scmp.eq.s32.totalorder %s19, 1
      %p44 = scmp.ne.s32.totalorder %s39, %s41
      %p45 = scmp.eq.s32.totalorder %s19, 0
      %p46 = por %p44, %p45
      %p47 = scmp.ne.s32.totalorder %s39, %s41
      %p48 = scmp.eq.s32.totalorder %s24, 1
      %p49 = por %p47, %p48
      %p50 = scmp.ne.s32.totalorder %s41, %s42
      %p51 = scmp.eq.s32.totalorder %s24, 0
      %p52 = por %p50, %p51
      %p53 = scmp.ne.s32.totalorder %s41, %s42
      %p54 = scmp.eq.s32.totalorder %s25, 1
      %p55 = por %p53, %p54
      %p57 = scmp.ne.s32.totalorder %s42, %s56
      %p58 = scmp.eq.s32.totalorder %s25, 0
      %p59 = por %p57, %p58
      %s61 = sadd.s32 %s60, 1
      %p64 = scmp.eq.s32.totalorder %s19, 1
      %p65 = scmp.ne.s32.totalorder %s60, %s62
      %p66 = scmp.eq.s32.totalorder %s19, 0
      %p67 = por %p65, %p66
      %p68 = scmp.ne.s32.totalorder %s60, %s62
      %p69 = scmp.eq.s32.totalorder %s24, 1
      %p70 = por %p68, %p69
      %p71 = scmp.ne.s32.totalorder %s62, %s63
      %p72 = scmp.eq.s32.totalorder %s24, 0
      %p73 = por %p71, %p72
      %p74 = scmp.ne.s32.totalorder %s62, %s63
      %p75 = scmp.eq.s32.totalorder %s25, 1
      %p76 = por %p74, %p75
      %p78 = scmp.ne.s32.totalorder %s63, %s77
      %p79 = scmp.eq.s32.totalorder %s25, 0
      %p80 = por %p78, %p79
      %s82 = sadd.s32 %s81, 1
      %p85 = scmp.eq.s32.totalorder %s19, 1
      %p86 = scmp.ne.s32.totalorder %s81, %s83
      %p87 = scmp.eq.s32.totalorder %s19, 0
      %p88 = por %p86, %p87
      %p89 = scmp.ne.s32.totalorder %s81, %s83
      %p90 = scmp.eq.s32.totalorder %s24, 1
      %p91 = por %p89, %p90
      %p92 = scmp.ne.s32.totalorder %s83, %s84
      %p93 = scmp.eq.s32.totalorder %s24, 0
      %p94 = por %p92, %p93
      %p95 = scmp.ne.s32.totalorder %s83, %s84
      %p96 = scmp.eq.s32.totalorder %s25, 1
      %p97 = por %p95, %p96
      %p99 = scmp.ne.s32.totalorder %s84, %s98
      %p100 = scmp.eq.s32.totalorder %s25, 0
      %p101 = por %p99, %p100
      %s102 = ssub.s32 %s26, %s38
      %s103 = ssub.s32 %s27, %s34
      %s104 = sor.u32 %s102, %s103
      %p105 = scmp.eq.s32.totalorder %s104, 0
      %s107 = sadd.s32 %s106, 1
      %s108 = scalar_select %p105, %s106, %s107
      %p111 = pneg %p105
      %p112 = scmp.eq.s32.totalorder %s19, 1
      %p113 = por %p111, %p112
      %p114 = scmp.ne.s32.totalorder %s106, %s109
      %p115 = scmp.eq.s32.totalorder %s19, 0
      %p116 = por %p114, %p115
      %p117 = scmp.ne.s32.totalorder %s106, %s109
      %p118 = scmp.eq.s32.totalorder %s24, 1
      %p119 = por %p117, %p118
      %p120 = scmp.ne.s32.totalorder %s109, %s110
      %p121 = scmp.eq.s32.totalorder %s24, 0
      %p122 = por %p120, %p121
      %p123 = scmp.ne.s32.totalorder %s109, %s110
      %p124 = scmp.eq.s32.totalorder %s25, 1
      %p125 = por %p123, %p124
      %p127 = scmp.ne.s32.totalorder %s110, %s126
      %p128 = scmp.eq.s32.totalorder %s25, 0
      %p129 = por %p127, %p128
      %s130 = ssub.s32 %s26, %s38
      %p131 = scmp.eq.s32.totalorder %s130, 0
      %s133 = sadd.s32 %s132, 1
      %s134 = scalar_select %p131, %s132, %s133
      %p137 = pneg %p131
      %p138 = scmp.eq.s32.totalorder %s19, 1
      %p139 = por %p137, %p138
      %p140 = scmp.ne.s32.totalorder %s132, %s135
      %p141 = scmp.eq.s32.totalorder %s19, 0
      %p142 = por %p140, %p141
      %p143 = scmp.ne.s32.totalorder %s132, %s135
      %p144 = scmp.eq.s32.totalorder %s24, 1
      %p145 = por %p143, %p144
      %p146 = scmp.ne.s32.totalorder %s135, %s136
      %p147 = scmp.eq.s32.totalorder %s24, 0
      %p148 = por %p146, %p147
      %p149 = scmp.ne.s32.totalorder %s135, %s136
      %p150 = scmp.eq.s32.totalorder %s25, 1
      %p151 = por %p149, %p150
      %p153 = scmp.ne.s32.totalorder %s136, %s152
      %p154 = scmp.eq.s32.totalorder %s25, 0
      %p155 = por %p153, %p154
      %p156 = scmp.le.s32.totalorder 1, %s19
      %p157 = scmp.lt.s32.totalorder %s19, 3
      %p158 = pnand %p156, %p157
      %p159 = pneg %p158
      // Predicated region
      $region9: #{tpu_custom_call.1} parent=5 // pred_check
        _
      $region10: #{tpu_custom_call.1} parent=5 // pred_check_branch
        %161 = sbr.rel (%p158) target = $region12
      $region11: #{tpu_custom_call.1} parent=5 // pred_region
        %s162 = ssub.s32 %s19, 1
        // Predicated region
        $region13: #{tpu_custom_call.1} parent=11 // pred_check
          %p163 = pneg %p52
        $region14: #{tpu_custom_call.1} parent=11 // pred_check_branch
          %165 = sbr.rel (%p163) target = $region16
        $region15: #{tpu_custom_call.1} parent=11 // pred_region
          %s167 = ssub.s32 16, 16
          %168 = vsyncadd [#allocation9], %s167
          %s170 = sshll.u32 %s0, 4
          %s171 = int_to_ptr.vmem [resolvable:$true] %s170
          %173 = dma.vmem_to_smem %s171, 16, [#allocation6], [#allocation9]
        $region16: #{tpu_custom_call.1} parent=11 // pred_fallthru
          _
        // Predicated region
        $region17: #{tpu_custom_call.1} parent=11 // pred_check
          %p174 = pneg %p73
        $region18: #{tpu_custom_call.1} parent=11 // pred_check_branch
          %176 = sbr.rel (%p174) target = $region20
        $region19: #{tpu_custom_call.1} parent=11 // pred_region
          _
        $region20: #{tpu_custom_call.1} parent=11 // pred_fallthru
          _
        // Predicated region
        $region21: #{tpu_custom_call.1} parent=11 // pred_check
          %p177 = pneg %p94
        $region22: #{tpu_custom_call.1} parent=11 // pred_check_branch
          %179 = sbr.rel (%p177) target = $region24
        $region23: #{tpu_custom_call.1} parent=11 // pred_region
          %s181 = ssub.s32 256, 256
          %182 = vsyncadd [#allocation7], %s181
          %s184 = sshll.u32 [#allocation10], 4
          %s185 = int_to_ptr.vmem [resolvable:$true] %s184
          %187 = dma.hbm_to_vmem [thread:$0]  %s2, 256, %s185, [#allocation7]
        $region24: #{tpu_custom_call.1} parent=11 // pred_fallthru
          _
      $region12: #{tpu_custom_call.1} parent=5 // pred_fallthru
        _
      %p188 = scmp.lt.s32.totalorder %s19, 2
      // Predicated region
      $region25: #{tpu_custom_call.1} parent=5 // pred_check
        %p189 = pneg %p188
      $region26: #{tpu_custom_call.1} parent=5 // pred_check_branch
        %191 = sbr.rel (%p189) target = $region28
      $region27: #{tpu_custom_call.1} parent=5 // pred_region
        // Predicated region
        $region29: #{tpu_custom_call.1} parent=27 // pred_check
          %p192 = pneg %p116
        $region30: #{tpu_custom_call.1} parent=27 // pred_check_branch
          %194 = sbr.rel (%p192) target = $region32
        $region31: #{tpu_custom_call.1} parent=27 // pred_region
          %s195 = sand.u32 %s106, 1
          %s196 = scalar_lea.sflag [#allocation12], %s195
          %s197 = sand.u32 %s106, 1
          %s198 = smul.addr %s197, 8
          %s199 = scalar_lea.vmem [#allocation11], %s198
          %s201 = ssub.s32 128, 128
          %202 = vsyncadd %s196, %s201
          %s203 = smul.addr %s27, 2
          %s204 = smul.addr %s26, 2
          %s205 = sadd.s32 %s203, %s204
          %s206 = smul.addr %s205, 64
          %s207 = scalar_lea.hbm %s3, %s206
          %s209 = sshll.u32 %s199, 4
          %s210 = int_to_ptr.vmem [resolvable:$true] %s209
          %212 = dma.hbm_to_vmem [thread:$0]  %s207, 128, %s210, %s196
        $region32: #{tpu_custom_call.1} parent=27 // pred_fallthru
          _
      $region28: #{tpu_custom_call.1} parent=5 // pred_fallthru
        _
      %p213 = scmp.le.s32.totalorder 1, %s19
      %p214 = scmp.lt.s32.totalorder %s19, 3
      %p215 = pnand %p213, %p214
      %p216 = pneg %p215
      // Predicated region
      $region33: #{tpu_custom_call.1} parent=5 // pred_check
        _
      $region34: #{tpu_custom_call.1} parent=5 // pred_check_branch
        %218 = sbr.rel (%p215) target = $region36
      $region35: #{tpu_custom_call.1} parent=5 // pred_region
        %s219 = ssub.s32 %s19, 1
        // Predicated region
        $region37: #{tpu_custom_call.1} parent=35 // pred_check
          %p220 = pneg %p52
        $region38: #{tpu_custom_call.1} parent=35 // pred_check_branch
          %222 = sbr.rel (%p220) target = $region40
        $region39: #{tpu_custom_call.1} parent=35 // pred_region
          %223 = dma.done [#allocation9], 16
        $region40: #{tpu_custom_call.1} parent=35 // pred_fallthru
          _
        // Predicated region
        $region41: #{tpu_custom_call.1} parent=35 // pred_check
          %p224 = pneg %p94
        $region42: #{tpu_custom_call.1} parent=35 // pred_check_branch
          %226 = sbr.rel (%p224) target = $region44
        $region43: #{tpu_custom_call.1} parent=35 // pred_region
          %227 = dma.done [#allocation7], 256
        $region44: #{tpu_custom_call.1} parent=35 // pred_fallthru
          _
        %s228 = sand.u32 %s109, 1
        %s229 = scalar_lea.sflag [#allocation12], %s228
        %s230 = sand.u32 %s109, 1
        %s231 = smul.addr %s230, 8
        %s232 = scalar_lea.vmem [#allocation11], %s231
        // Predicated region
        $region45: #{tpu_custom_call.1} parent=35 // pred_check
          %p233 = pneg %p122
        $region46: #{tpu_custom_call.1} parent=35 // pred_check_branch
          %235 = sbr.rel (%p233) target = $region48
        $region47: #{tpu_custom_call.1} parent=35 // pred_region
          %236 = dma.done %s229, 128
        $region48: #{tpu_custom_call.1} parent=35 // pred_fallthru
          _
        %237 = sfence
        %p238 = pneg %p52
        %p239 = pneg %p49
        %p240 = pneg %p73
        %p241 = pneg %p70
        %p242 = pneg %p94
        %p243 = pneg %p91
        %s244 = sand.u32 %s109, 1
        %s245 = scalar_lea.sflag [#allocation12], %s244
        %s246 = sand.u32 %s109, 1
        %s247 = smul.addr %s246, 8
        %s248 = scalar_lea.vmem [#allocation11], %s247
        %p249 = pneg %p122
        %p250 = pneg %p119
        %p251 = pneg %p148
        %p252 = pneg %p145
        %s253 = sand.u32 %s135, 1
        %s254 = scalar_lea.sflag [#allocation8], %s253
        %s255 = sand.u32 %s135, 1
        %s256 = smul.addr %s255, 2
        %s257 = scalar_lea.vmem [#allocation13], %s256
        %p258 = scmp.eq.s32.totalorder %s29, 0
        // Predicated region
        $region49: #{tpu_custom_call.1} parent=35 // pred_check
          %p259 = pneg %p258
        $region50: #{tpu_custom_call.1} parent=35 // pred_check_branch
          %261 = sbr.rel (%p259) target = $region52
        $region51: #{tpu_custom_call.1} parent=35 // pred_region
          %v262 = vlaneseq
          %vm263 = vcmp.ge.s32.totalorder %v262, 0
          %vm264 = vcmp.lt.s32.totalorder %v262, 256
          %vm265 = vmand %vm263, %vm264
          %266 = vst.msk [vmem:[#allocation2] sm:$0x3] %vm265, 0.0
          %267 = vst.msk [vmem:[#allocation3] sm:$0x3] %vm265, -inf
        $region52: #{tpu_custom_call.1} parent=35 // pred_fallthru
          _
        %v268 = vld [vmem:[%s232] sm:$0xff]
        %v269 = vld [vmem:[#allocation2] sm:$0x3]
        %v271 = vcombine.high %v268, %v268
        %vm273 = vcmask 1043456
        %v274 = vsel %vm273, %v268, 0.0
        %v275 = vrot.slane %v274, 4
        %v276 = vadd.f32 %v274, %v275
        %v277 = vrot.slane %v276, 2
        %v278 = vadd.f32 %v276, %v277
        %v279 = vrot.slane %v278, 1
        %v280 = vadd.f32 %v278, %v279
        %v281 = vsel %vm273, %v271, 0.0
        %v282 = vrot.slane %v281, 4
        %v283 = vadd.f32 %v281, %v282
        %v284 = vrot.slane %v283, 2
        %v285 = vadd.f32 %v283, %v284
        %v286 = vrot.slane %v285, 1
        %v287 = vadd.f32 %v285, %v286
        %v290 = vcombine.low %v280, %v287
        %v292 = vunpack.c.l.s4 1966171168
        %v293 = vunpack.c.0.s8 %v292
        %v294 = vlaneseq
        %v295 = vshrl.u32 %v294, 7
        %v296 = vsub.s32 %v293, %v295
        %v297 = vrot.slane %v290, %v296
        %v299 = vunpack.c.l.s4 1966171168
        %v300 = vunpack.c.0.s8 %v299
        %v301 = vlaneseq
        %v302 = vshrl.u32 %v301, 7
        %v303 = vsub.s32 %v300, %v302
        %v304 = vrot.slane %v297, %v303
        %v306 = vadd.f32 %v269, %v304
        %v307 = vlaneseq
        %vm308 = vcmp.ge.s32.totalorder %v307, 0
        %vm309 = vcmp.lt.s32.totalorder %v307, 256
        %vm310 = vmand %vm308, %vm309
        %311 = vst.msk [vmem:[#allocation2] sm:$0x3] %vm310, %v306
        %v312 = vld [vmem:[#allocation3] sm:$0x3]
        %v313 = vsel %vm273, %v268, -inf
        %v314 = vrot.slane %v313, 4
        %v315 = vmax.f32 %v313, %v314
        %v316 = vrot.slane %v315, 2
        %v317 = vmax.f32 %v315, %v316
        %v318 = vrot.slane %v317, 1
        %v319 = vmax.f32 %v317, %v318
        %v320 = vsel %vm273, %v271, -inf
        %v321 = vrot.slane %v320, 4
        %v322 = vmax.f32 %v320, %v321
        %v323 = vrot.slane %v322, 2
        %v324 = vmax.f32 %v322, %v323
        %v325 = vrot.slane %v324, 1
        %v326 = vmax.f32 %v324, %v325
        %v329 = vcombine.low %v319, %v326
        %v331 = vunpack.c.l.s4 1966171168
        %v332 = vunpack.c.0.s8 %v331
        %v333 = vlaneseq
        %v334 = vshrl.u32 %v333, 7
        %v335 = vsub.s32 %v332, %v334
        %v336 = vrot.slane %v329, %v335
        %v338 = vunpack.c.l.s4 1966171168
        %v339 = vunpack.c.0.s8 %v338
        %v340 = vlaneseq
        %v341 = vshrl.u32 %v340, 7
        %v342 = vsub.s32 %v339, %v341
        %v343 = vrot.slane %v336, %v342
        %v345 = vmax.f32 %v312, %v343
        %346 = vst.msk [vmem:[#allocation3] sm:$0x3] %vm310, %v345
        // Predicated region
        $region53: #{tpu_custom_call.1} parent=35 // pred_check
          %p347 = pneg %p258
        $region54: #{tpu_custom_call.1} parent=35 // pred_check_branch
          %349 = sbr.rel (%p347) target = $region56
        $region55: #{tpu_custom_call.1} parent=35 // pred_region
          %350 = vst [vmem:[#allocation4] sm:$0xff] 0.0
          %v351 = vld [vmem:[#allocation2] sm:$0x3]
          %v352 = vmul.f32 %v351, 0.25
          %s353 = scalar_lea.vmem [#allocation4], 2
          %354 = vst.msk [vmem:[%s353] ss:$2 sm:$0x3] %vm310, %v352
          %v355 = vld [vmem:[#allocation3] sm:$0x3]
          %s356 = scalar_lea.vmem [#allocation4], 3
          %357 = vst.msk [vmem:[%s356] ss:$2 sm:$0x3] %vm310, %v355
          %s358 = sld [smem:[#allocation6]]
          %s359 = sld [smem:[#allocation6 + $0x1]]
          %s360 = sld [smem:[#allocation6 + $0x2]]
          %s361 = sld [smem:[#allocation6 + $0x3]]
          %s362 = sld [smem:[#allocation6 + $0x4]]
          %s363 = sld [smem:[#allocation6 + $0x5]]
          %s364 = sld [smem:[#allocation6 + $0x6]]
          %s365 = sld [smem:[#allocation6 + $0x7]]
          %s366 = sld [smem:[#allocation6 + $0x8]]
          %s367 = sld [smem:[#allocation6 + $0x9]]
          %s368 = sld [smem:[#allocation6 + $0xa]]
          %s369 = sld [smem:[#allocation6 + $0xb]]
          %s370 = sld [smem:[#allocation6 + $0xc]]
          %s371 = sld [smem:[#allocation6 + $0xd]]
          %s372 = sld [smem:[#allocation6 + $0xe]]
          %s373 = sld [smem:[#allocation6 + $0xf]]
          %s374 = sld [smem:[#allocation6 + $0x10]]
          %s375 = sld [smem:[#allocation6 + $0x11]]
          %s376 = sld [smem:[#allocation6 + $0x12]]
          %s377 = sld [smem:[#allocation6 + $0x13]]
          %s378 = sld [smem:[#allocation6 + $0x14]]
          %s379 = sld [smem:[#allocation6 + $0x15]]
          %s380 = sld [smem:[#allocation6 + $0x16]]
          %s381 = sld [smem:[#allocation6 + $0x17]]
          %s382 = sld [smem:[#allocation6 + $0x18]]
          %s383 = sld [smem:[#allocation6 + $0x19]]
          %s384 = sld [smem:[#allocation6 + $0x1a]]
          %s385 = sld [smem:[#allocation6 + $0x1b]]
          %s386 = sld [smem:[#allocation6 + $0x1c]]
          %s387 = sld [smem:[#allocation6 + $0x1d]]
          %s388 = sld [smem:[#allocation6 + $0x1e]]
          %s389 = sld [smem:[#allocation6 + $0x1f]]
          %s390 = sld [smem:[#allocation6 + $0x20]]
          %s391 = sld [smem:[#allocation6 + $0x21]]
          %s392 = sld [smem:[#allocation6 + $0x22]]
          %s393 = sld [smem:[#allocation6 + $0x23]]
          %s394 = sld [smem:[#allocation6 + $0x24]]
          %s395 = sld [smem:[#allocation6 + $0x25]]
          %s396 = sld [smem:[#allocation6 + $0x26]]
          %s397 = sld [smem:[#allocation6 + $0x27]]
          %s398 = sld [smem:[#allocation6 + $0x28]]
          %s399 = sld [smem:[#allocation6 + $0x29]]
          %s400 = sld [smem:[#allocation6 + $0x2a]]
          %s401 = sld [smem:[#allocation6 + $0x2b]]
          %s402 = sld [smem:[#allocation6 + $0x2c]]
          %s403 = sld [smem:[#allocation6 + $0x2d]]
          %s404 = sld [smem:[#allocation6 + $0x2e]]
          %s405 = sld [smem:[#allocation6 + $0x2f]]
          %s406 = sld [smem:[#allocation6 + $0x30]]
          %s407 = sld [smem:[#allocation6 + $0x31]]
          %s408 = sld [smem:[#allocation6 + $0x32]]
          %s409 = sld [smem:[#allocation6 + $0x33]]
          %s410 = sld [smem:[#allocation6 + $0x34]]
          %s411 = sld [smem:[#allocation6 + $0x35]]
          %s412 = sld [smem:[#allocation6 + $0x36]]
          %s413 = sld [smem:[#allocation6 + $0x37]]
          %s414 = sld [smem:[#allocation6 + $0x38]]
          %s415 = sld [smem:[#allocation6 + $0x39]]
          %s416 = sld [smem:[#allocation6 + $0x3a]]
          %s417 = sld [smem:[#allocation6 + $0x3b]]
          %s418 = sld [smem:[#allocation6 + $0x3c]]
          %s419 = sld [smem:[#allocation6 + $0x3d]]
          %s420 = sld [smem:[#allocation6 + $0x3e]]
          %s421 = sld [smem:[#allocation6 + $0x3f]]
          %s422 = sld [smem:[#allocation6 + $0x40]]
          %s423 = sld [smem:[#allocation6 + $0x41]]
          %s424 = sld [smem:[#allocation6 + $0x42]]
          %s425 = sld [smem:[#allocation6 + $0x43]]
          %s426 = sld [smem:[#allocation6 + $0x44]]
          %s427 = sld [smem:[#allocation6 + $0x45]]
          %s428 = sld [smem:[#allocation6 + $0x46]]
          %s429 = sld [smem:[#allocation6 + $0x47]]
          %s430 = sld [smem:[#allocation6 + $0x48]]
          %s431 = sld [smem:[#allocation6 + $0x49]]
          %s432 = sld [smem:[#allocation6 + $0x4a]]
          %s433 = sld [smem:[#allocation6 + $0x4b]]
          %s434 = sld [smem:[#allocation6 + $0x4c]]
          %s435 = sld [smem:[#allocation6 + $0x4d]]
          %s436 = sld [smem:[#allocation6 + $0x4e]]
          %s437 = sld [smem:[#allocation6 + $0x4f]]
          %s438 = sld [smem:[#allocation6 + $0x50]]
          %s439 = sld [smem:[#allocation6 + $0x51]]
          %s440 = sld [smem:[#allocation6 + $0x52]]
          %s441 = sld [smem:[#allocation6 + $0x53]]
          %s442 = sld [smem:[#allocation6 + $0x54]]
          %s443 = sld [smem:[#allocation6 + $0x55]]
          %s444 = sld [smem:[#allocation6 + $0x56]]
          %s445 = sld [smem:[#allocation6 + $0x57]]
          %s446 = sld [smem:[#allocation6 + $0x58]]
          %s447 = sld [smem:[#allocation6 + $0x59]]
          %s448 = sld [smem:[#allocation6 + $0x5a]]
          %s449 = sld [smem:[#allocation6 + $0x5b]]
          %s450 = sld [smem:[#allocation6 + $0x5c]]
          %s451 = sld [smem:[#allocation6 + $0x5d]]
          %s452 = sld [smem:[#allocation6 + $0x5e]]
          %s453 = sld [smem:[#allocation6 + $0x5f]]
          %s454 = sld [smem:[#allocation6 + $0x60]]
          %s455 = sld [smem:[#allocation6 + $0x61]]
          %s456 = sld [smem:[#allocation5]]
          %v457 = vstv %s456
          %v458 = vld [vmem:[#allocation4] ss:$2 sm:$0xf]
          %v459 = vstv %s358
          %v460 = vmul.f32 %v458, %v459
          %v461 = vstv %s365
          %v462 = vmul.f32 %v458, %v461
          %464 = vrot.lane.b32.xlu0 %v462, 112
          %v465 = vpop.permute.xlu0 %464
          %v466 = vrot.slane %v465, 1
          %vm467 = vcmask 916480
          %v468 = vsel %vm467, %v465, %v466
          %v470 = vadd.f32 %v460, %v468
          %v471 = vstv %s372
          %v472 = vmul.f32 %v458, %v471
          %474 = vrot.lane.b32.xlu0 %v472, 96
          %v475 = vpop.permute.xlu0 %474
          %v476 = vrot.slane %v475, 1
          %vm477 = vcmask 785408
          %v478 = vsel %vm477, %v475, %v476
          %v480 = vadd.f32 %v470, %v478
          %v481 = vstv %s379
          %v482 = vmul.f32 %v458, %v481
          %484 = vrot.lane.b32.xlu0 %v482, 80
          %v485 = vpop.permute.xlu0 %484
          %v486 = vrot.slane %v485, 1
          %vm487 = vcmask 654336
          %v488 = vsel %vm487, %v485, %v486
          %v490 = vadd.f32 %v480, %v488
          %v491 = vstv %s386
          %493 = vrot.lane.b32.xlu0 %v458, 115
          %v494 = vpop.permute.xlu0 %493
          %v495 = vrot.slane %v494, 1
          %v496 = vrot.slane %v494, 2
          %vm497 = vcmask 941056
          %v498 = vsel %vm497, %v495, %v496
          %v500 = vmul.f32 %v498, %v491
          %502 = vrot.lane.b32.xlu0 %v500, 77
          %v503 = vpop.permute.xlu0 %502
          %v504 = vrot.slane %v503, 7
          %vm505 = vcmask 629760
          %v506 = vsel %vm505, %v504, %v503
          %v508 = vadd.f32 %v490, %v506
          %v509 = vstv %s393
          %510 = vrot.lane.b32.xlu0 %v458, 99
          %v511 = vpop.permute.xlu0 %510
          %v512 = vrot.slane %v511, 1
          %v513 = vrot.slane %v511, 2
          %vm514 = vcmask 809984
          %v515 = vsel %vm514, %v512, %v513
          %v517 = vmul.f32 %v515, %v509
          %519 = vrot.lane.b32.xlu0 %v517, 77
          %v520 = vpop.permute.xlu0 %519
          %v521 = vrot.slane %v520, 7
          %v522 = vsel %vm505, %v521, %v520
          %v524 = vadd.f32 %v508, %v522
          %v525 = vstv %s400
          %526 = vrot.lane.b32.xlu0 %v458, 83
          %v527 = vpop.permute.xlu0 %526
          %v528 = vrot.slane %v527, 1
          %v529 = vrot.slane %v527, 2
          %vm530 = vcmask 678912
          %v531 = vsel %vm530, %v528, %v529
          %v533 = vmul.f32 %v531, %v525
          %535 = vrot.lane.b32.xlu0 %v533, 77
          %v536 = vpop.permute.xlu0 %535
          %v537 = vrot.slane %v536, 7
          %v538 = vsel %vm505, %v537, %v536
          %v540 = vadd.f32 %v524, %v538
          %v541 = vld [vmem:[#allocation10] ss:$8 sm:$0x3]
          %543 = vrot.lane.b32.xlu0 %v541, 77
          %v544 = vpop.permute.xlu0 %543
          %v545 = vrot.slane %v544, 7
          %v546 = vsel %vm505, %v545, %v544
          %v548 = vmul.f32 %v540, %v546
          %v549 = vadd.f32 %v457, %v548
          %v550 = vstv %s359
          %v551 = vmul.f32 %v458, %v550
          %v552 = vstv %s366
          %v553 = vmul.f32 %v458, %v552
          %555 = vrot.lane.b32.xlu0 %v553, 112
          %v556 = vpop.permute.xlu0 %555
          %v557 = vrot.slane %v556, 1
          %v558 = vsel %vm467, %v556, %v557
          %v560 = vadd.f32 %v551, %v558
          %v561 = vstv %s373
          %v562 = vmul.f32 %v458, %v561
          %564 = vrot.lane.b32.xlu0 %v562, 96
          %v565 = vpop.permute.xlu0 %564
          %v566 = vrot.slane %v565, 1
          %v567 = vsel %vm477, %v565, %v566
          %v569 = vadd.f32 %v560, %v567
          %v570 = vstv %s380
          %v571 = vmul.f32 %v458, %v570
          %573 = vrot.lane.b32.xlu0 %v571, 80
          %v574 = vpop.permute.xlu0 %573
          %v575 = vrot.slane %v574, 1
          %v576 = vsel %vm487, %v574, %v575
          %v578 = vadd.f32 %v569, %v576
          %v579 = vstv %s387
          %580 = vrot.lane.b32.xlu0 %v458, 114
          %v581 = vpop.permute.xlu0 %580
          %v582 = vrot.slane %v581, 1
          %v583 = vrot.slane %v581, 2
          %vm584 = vcmask 932864
          %v585 = vsel %vm584, %v582, %v583
          %v587 = vmul.f32 %v585, %v579
          %589 = vrot.lane.b32.xlu0 %v587, 78
          %v590 = vpop.permute.xlu0 %589
          %v591 = vrot.slane %v590, 7
          %vm592 = vcmask 637952
          %v593 = vsel %vm592, %v591, %v590
          %v595 = vadd.f32 %v578, %v593
          %v596 = vstv %s394
          %597 = vrot.lane.b32.xlu0 %v458, 98
          %v598 = vpop.permute.xlu0 %597
          %v599 = vrot.slane %v598, 1
          %v600 = vrot.slane %v598, 2
          %vm601 = vcmask 801792
          %v602 = vsel %vm601, %v599, %v600
          %v604 = vmul.f32 %v602, %v596
          %606 = vrot.lane.b32.xlu0 %v604, 78
          %v607 = vpop.permute.xlu0 %606
          %v608 = vrot.slane %v607, 7
          %v609 = vsel %vm592, %v608, %v607
          %v611 = vadd.f32 %v595, %v609
          %v612 = vstv %s401
          %613 = vrot.lane.b32.xlu0 %v458, 82
          %v614 = vpop.permute.xlu0 %613
          %v615 = vrot.slane %v614, 1
          %v616 = vrot.slane %v614, 2
          %vm617 = vcmask 670720
          %v618 = vsel %vm617, %v615, %v616
          %v620 = vmul.f32 %v618, %v612
          %622 = vrot.lane.b32.xlu0 %v620, 78
          %v623 = vpop.permute.xlu0 %622
          %v624 = vrot.slane %v623, 7
          %v625 = vsel %vm592, %v624, %v623
          %v627 = vadd.f32 %v611, %v625
          %s628 = scalar_lea.vmem [#allocation10], 1
          %v629 = vld [vmem:[%s628] ss:$8 sm:$0x3]
          %631 = vrot.lane.b32.xlu0 %v629, 78
          %v632 = vpop.permute.xlu0 %631
          %v633 = vrot.slane %v632, 7
          %v634 = vsel %vm592, %v633, %v632
          %v636 = vmul.f32 %v627, %v634
          %638 = vrot.lane.b32.xlu0 %v636, 127
          %v639 = vpop.permute.xlu0 %638
          %v640 = vrot.slane %v639, 1
          %vm641 = vcmask 1039360
          %v642 = vsel %vm641, %v639, %v640
          %v644 = vadd.f32 %v549, %v642
          %v645 = vstv %s360
          %v646 = vmul.f32 %v458, %v645
          %v647 = vstv %s367
          %v648 = vmul.f32 %v458, %v647
          %650 = vrot.lane.b32.xlu0 %v648, 112
          %v651 = vpop.permute.xlu0 %650
          %v652 = vrot.slane %v651, 1
          %v653 = vsel %vm467, %v651, %v652
          %v655 = vadd.f32 %v646, %v653
          %v656 = vstv %s374
          %v657 = vmul.f32 %v458, %v656
          %659 = vrot.lane.b32.xlu0 %v657, 96
          %v660 = vpop.permute.xlu0 %659
          %v661 = vrot.slane %v660, 1
          %v662 = vsel %vm477, %v660, %v661
          %v664 = vadd.f32 %v655, %v662
          %v665 = vstv %s381
          %v666 = vmul.f32 %v458, %v665
          %668 = vrot.lane.b32.xlu0 %v666, 80
          %v669 = vpop.permute.xlu0 %668
          %v670 = vrot.slane %v669, 1
          %v671 = vsel %vm487, %v669, %v670
          %v673 = vadd.f32 %v664, %v671
          %v674 = vstv %s388
          %675 = vrot.lane.b32.xlu0 %v458, 113
          %v676 = vpop.permute.xlu0 %675
          %v677 = vrot.slane %v676, 1
          %v678 = vrot.slane %v676, 2
          %vm679 = vcmask 924672
          %v680 = vsel %vm679, %v677, %v678
          %v682 = vmul.f32 %v680, %v674
          %684 = vrot.lane.b32.xlu0 %v682, 79
          %v685 = vpop.permute.xlu0 %684
          %v686 = vrot.slane %v685, 7
          %vm687 = vcmask 646144
          %v688 = vsel %vm687, %v686, %v685
          %v690 = vadd.f32 %v673, %v688
          %v691 = vstv %s395
          %692 = vrot.lane.b32.xlu0 %v458, 97
          %v693 = vpop.permute.xlu0 %692
          %v694 = vrot.slane %v693, 1
          %v695 = vrot.slane %v693, 2
          %vm696 = vcmask 793600
          %v697 = vsel %vm696, %v694, %v695
          %v699 = vmul.f32 %v697, %v691
          %701 = vrot.lane.b32.xlu0 %v699, 79
          %v702 = vpop.permute.xlu0 %701
          %v703 = vrot.slane %v702, 7
          %v704 = vsel %vm687, %v703, %v702
          %v706 = vadd.f32 %v690, %v704
          %v707 = vstv %s402
          %708 = vrot.lane.b32.xlu0 %v458, 81
          %v709 = vpop.permute.xlu0 %708
          %v710 = vrot.slane %v709, 1
          %v711 = vrot.slane %v709, 2
          %vm712 = vcmask 662528
          %v713 = vsel %vm712, %v710, %v711
          %v715 = vmul.f32 %v713, %v707
          %717 = vrot.lane.b32.xlu0 %v715, 79
          %v718 = vpop.permute.xlu0 %717
          %v719 = vrot.slane %v718, 7
          %v720 = vsel %vm687, %v719, %v718
          %v722 = vadd.f32 %v706, %v720
          %s723 = scalar_lea.vmem [#allocation10], 2
          %v724 = vld [vmem:[%s723] ss:$8 sm:$0x3]
          %726 = vrot.lane.b32.xlu0 %v724, 79
          %v727 = vpop.permute.xlu0 %726
          %v728 = vrot.slane %v727, 7
          %v729 = vsel %vm687, %v728, %v727
          %v731 = vmul.f32 %v722, %v729
          %733 = vrot.lane.b32.xlu0 %v731, 126
          %v734 = vpop.permute.xlu0 %733
          %v735 = vrot.slane %v734, 1
          %vm736 = vcmask 1031168
          %v737 = vsel %vm736, %v734, %v735
          %v739 = vadd.f32 %v644, %v737
          %v740 = vstv %s361
          %v741 = vmul.f32 %v458, %v740
          %v742 = vstv %s368
          %v743 = vmul.f32 %v458, %v742
          %745 = vrot.lane.b32.xlu0 %v743, 112
          %v746 = vpop.permute.xlu0 %745
          %v747 = vrot.slane %v746, 1
          %v748 = vsel %vm467, %v746, %v747
          %v750 = vadd.f32 %v741, %v748
          %v751 = vstv %s375
          %v752 = vmul.f32 %v458, %v751
          %754 = vrot.lane.b32.xlu0 %v752, 96
          %v755 = vpop.permute.xlu0 %754
          %v756 = vrot.slane %v755, 1
          %v757 = vsel %vm477, %v755, %v756
          %v759 = vadd.f32 %v750, %v757
          %v760 = vstv %s382
          %v761 = vrot.slane %v458, 1
          %v763 = vmul.f32 %v761, %v760
          %765 = vrot.lane.b32.xlu0 %v763, 80
          %v766 = vpop.permute.xlu0 %765
          %v767 = vrot.slane %v766, 7
          %v768 = vsel %vm487, %v767, %v766
          %v770 = vadd.f32 %v759, %v768
          %v771 = vstv %s389
          %772 = vrot.lane.b32.xlu0 %v458, 112
          %v773 = vpop.permute.xlu0 %772
          %v774 = vrot.slane %v773, 1
          %v775 = vrot.slane %v773, 2
          %v776 = vsel %vm467, %v774, %v775
          %v778 = vmul.f32 %v776, %v771
          %780 = vrot.lane.b32.xlu0 %v778, 80
          %v781 = vpop.permute.xlu0 %780
          %v782 = vrot.slane %v781, 7
          %v783 = vsel %vm487, %v782, %v781
          %v785 = vadd.f32 %v770, %v783
          %v786 = vstv %s396
          %787 = vrot.lane.b32.xlu0 %v458, 96
          %v788 = vpop.permute.xlu0 %787
          %v789 = vrot.slane %v788, 1
          %v790 = vrot.slane %v788, 2
          %v791 = vsel %vm477, %v789, %v790
          %v793 = vmul.f32 %v791, %v786
          %795 = vrot.lane.b32.xlu0 %v793, 80
          %v796 = vpop.permute.xlu0 %795
          %v797 = vrot.slane %v796, 7
          %v798 = vsel %vm487, %v797, %v796
          %v800 = vadd.f32 %v785, %v798
          %v801 = vstv %s403
          %802 = vrot.lane.b32.xlu0 %v458, 80
          %v803 = vpop.permute.xlu0 %802
          %v804 = vrot.slane %v803, 1
          %v805 = vrot.slane %v803, 2
          %v806 = vsel %vm487, %v804, %v805
          %v808 = vmul.f32 %v806, %v801
          %810 = vrot.lane.b32.xlu0 %v808, 80
          %v811 = vpop.permute.xlu0 %810
          %v812 = vrot.slane %v811, 7
          %v813 = vsel %vm487, %v812, %v811
          %v815 = vadd.f32 %v800, %v813
          %817 = vrot.lane.b32.xlu0 %v815, 125
          %v818 = vpop.permute.xlu0 %817
          %v819 = vrot.slane %v818, 1
          %vm820 = vcmask 1022976
          %v821 = vsel %vm820, %v818, %v819
          %v823 = vadd.f32 %v739, %v821
          %v824 = vstv %s362
          %v825 = vmul.f32 %v458, %v824
          %v826 = vstv %s369
          %v827 = vmul.f32 %v458, %v826
          %829 = vrot.lane.b32.xlu0 %v827, 112
          %v830 = vpop.permute.xlu0 %829
          %v831 = vrot.slane %v830, 1
          %v832 = vsel %vm467, %v830, %v831
          %v834 = vadd.f32 %v825, %v832
          %v835 = vstv %s376
          %v836 = vmul.f32 %v458, %v835
          %838 = vrot.lane.b32.xlu0 %v836, 96
          %v839 = vpop.permute.xlu0 %838
          %v840 = vrot.slane %v839, 1
          %v841 = vsel %vm477, %v839, %v840
          %v843 = vadd.f32 %v834, %v841
          %v844 = vstv %s383
          %845 = vrot.lane.b32.xlu0 %v458, 127
          %v846 = vpop.permute.xlu0 %845
          %v847 = vrot.slane %v846, 1
          %v848 = vrot.slane %v846, 2
          %v849 = vsel %vm641, %v847, %v848
          %v851 = vmul.f32 %v849, %v844
          %853 = vrot.lane.b32.xlu0 %v851, 81
          %v854 = vpop.permute.xlu0 %853
          %v855 = vrot.slane %v854, 7
          %v856 = vsel %vm712, %v855, %v854
          %v858 = vadd.f32 %v843, %v856
          %v859 = vstv %s390
          %860 = vrot.lane.b32.xlu0 %v458, 111
          %v861 = vpop.permute.xlu0 %860
          %v862 = vrot.slane %v861, 1
          %v863 = vrot.slane %v861, 2
          %vm864 = vcmask 908288
          %v865 = vsel %vm864, %v862, %v863
          %v867 = vmul.f32 %v865, %v859
          %869 = vrot.lane.b32.xlu0 %v867, 81
          %v870 = vpop.permute.xlu0 %869
          %v871 = vrot.slane %v870, 7
          %v872 = vsel %vm712, %v871, %v870
          %v874 = vadd.f32 %v858, %v872
          %v875 = vstv %s397
          %876 = vrot.lane.b32.xlu0 %v458, 95
          %v877 = vpop.permute.xlu0 %876
          %v878 = vrot.slane %v877, 1
          %v879 = vrot.slane %v877, 2
          %vm880 = vcmask 777216
          %v881 = vsel %vm880, %v878, %v879
          %v883 = vmul.f32 %v881, %v875
          %885 = vrot.lane.b32.xlu0 %v883, 81
          %v886 = vpop.permute.xlu0 %885
          %v887 = vrot.slane %v886, 7
          %v888 = vsel %vm712, %v887, %v886
          %v890 = vadd.f32 %v874, %v888
          %v891 = vstv %s404
          %892 = vrot.lane.b32.xlu0 %v458, 79
          %v893 = vpop.permute.xlu0 %892
          %v894 = vrot.slane %v893, 1
          %v895 = vrot.slane %v893, 2
          %v896 = vsel %vm687, %v894, %v895
          %v898 = vmul.f32 %v896, %v891
          %900 = vrot.lane.b32.xlu0 %v898, 81
          %v901 = vpop.permute.xlu0 %900
          %v902 = vrot.slane %v901, 7
          %v903 = vsel %vm712, %v902, %v901
          %v905 = vadd.f32 %v890, %v903
          %s906 = scalar_lea.vmem [#allocation10], 4
          %v907 = vld [vmem:[%s906] ss:$8 sm:$0x3]
          %909 = vrot.lane.b32.xlu0 %v907, 81
          %v910 = vpop.permute.xlu0 %909
          %v911 = vrot.slane %v910, 7
          %v912 = vsel %vm712, %v911, %v910
          %v914 = vmul.f32 %v905, %v912
          %916 = vrot.lane.b32.xlu0 %v914, 124
          %v917 = vpop.permute.xlu0 %916
          %v918 = vrot.slane %v917, 1
          %vm919 = vcmask 1014784
          %v920 = vsel %vm919, %v917, %v918
          %v922 = vadd.f32 %v823, %v920
          %v923 = vstv %s363
          %v924 = vmul.f32 %v458, %v923
          %v925 = vstv %s370
          %v926 = vmul.f32 %v458, %v925
          %928 = vrot.lane.b32.xlu0 %v926, 112
          %v929 = vpop.permute.xlu0 %928
          %v930 = vrot.slane %v929, 1
          %v931 = vsel %vm467, %v929, %v930
          %v933 = vadd.f32 %v924, %v931
          %v934 = vstv %s377
          %v935 = vmul.f32 %v458, %v934
          %937 = vrot.lane.b32.xlu0 %v935, 96
          %v938 = vpop.permute.xlu0 %937
          %v939 = vrot.slane %v938, 1
          %v940 = vsel %vm477, %v938, %v939
          %v942 = vadd.f32 %v933, %v940
          %v943 = vstv %s384
          %944 = vrot.lane.b32.xlu0 %v458, 126
          %v945 = vpop.permute.xlu0 %944
          %v946 = vrot.slane %v945, 1
          %v947 = vrot.slane %v945, 2
          %v948 = vsel %vm736, %v946, %v947
          %v950 = vmul.f32 %v948, %v943
          %952 = vrot.lane.b32.xlu0 %v950, 82
          %v953 = vpop.permute.xlu0 %952
          %v954 = vrot.slane %v953, 7
          %v955 = vsel %vm617, %v954, %v953
          %v957 = vadd.f32 %v942, %v955
          %v958 = vstv %s391
          %959 = vrot.lane.b32.xlu0 %v458, 110
          %v960 = vpop.permute.xlu0 %959
          %v961 = vrot.slane %v960, 1
          %v962 = vrot.slane %v960, 2
          %vm963 = vcmask 900096
          %v964 = vsel %vm963, %v961, %v962
          %v966 = vmul.f32 %v964, %v958
          %968 = vrot.lane.b32.xlu0 %v966, 82
          %v969 = vpop.permute.xlu0 %968
          %v970 = vrot.slane %v969, 7
          %v971 = vsel %vm617, %v970, %v969
          %v973 = vadd.f32 %v957, %v971
          %v974 = vstv %s398
          %975 = vrot.lane.b32.xlu0 %v458, 94
          %v976 = vpop.permute.xlu0 %975
          %v977 = vrot.slane %v976, 1
          %v978 = vrot.slane %v976, 2
          %vm979 = vcmask 769024
          %v980 = vsel %vm979, %v977, %v978
          %v982 = vmul.f32 %v980, %v974
          %984 = vrot.lane.b32.xlu0 %v982, 82
          %v985 = vpop.permute.xlu0 %984
          %v986 = vrot.slane %v985, 7
          %v987 = vsel %vm617, %v986, %v985
          %v989 = vadd.f32 %v973, %v987
          %v990 = vstv %s405
          %991 = vrot.lane.b32.xlu0 %v458, 78
          %v992 = vpop.permute.xlu0 %991
          %v993 = vrot.slane %v992, 1
          %v994 = vrot.slane %v992, 2
          %v995 = vsel %vm592, %v993, %v994
          %v997 = vmul.f32 %v995, %v990
          %999 = vrot.lane.b32.xlu0 %v997, 82
          %v1000 = vpop.permute.xlu0 %999
          %v1001 = vrot.slane %v1000, 7
          %v1002 = vsel %vm617, %v1001, %v1000
          %v1004 = vadd.f32 %v989, %v1002
          %s1005 = scalar_lea.vmem [#allocation10], 5
          %v1006 = vld [vmem:[%s1005] ss:$8 sm:$0x3]
          %1008 = vrot.lane.b32.xlu0 %v1006, 82
          %v1009 = vpop.permute.xlu0 %1008
          %v1010 = vrot.slane %v1009, 7
          %v1011 = vsel %vm617, %v1010, %v1009
          %v1013 = vmul.f32 %v1004, %v1011
          %1015 = vrot.lane.b32.xlu0 %v1013, 123
          %v1016 = vpop.permute.xlu0 %1015
          %v1017 = vrot.slane %v1016, 1
          %vm1018 = vcmask 1006592
          %v1019 = vsel %vm1018, %v1016, %v1017
          %v1021 = vadd.f32 %v922, %v1019
          %v1022 = vstv %s364
          %v1023 = vmul.f32 %v458, %v1022
          %v1024 = vstv %s371
          %v1025 = vmul.f32 %v458, %v1024
          %1027 = vrot.lane.b32.xlu0 %v1025, 112
          %v1028 = vpop.permute.xlu0 %1027
          %v1029 = vrot.slane %v1028, 1
          %v1030 = vsel %vm467, %v1028, %v1029
          %v1032 = vadd.f32 %v1023, %v1030
          %v1033 = vstv %s378
          %v1034 = vmul.f32 %v458, %v1033
          %1036 = vrot.lane.b32.xlu0 %v1034, 96
          %v1037 = vpop.permute.xlu0 %1036
          %v1038 = vrot.slane %v1037, 1
          %v1039 = vsel %vm477, %v1037, %v1038
          %v1041 = vadd.f32 %v1032, %v1039
          %v1042 = vstv %s385
          %1043 = vrot.lane.b32.xlu0 %v458, 125
          %v1044 = vpop.permute.xlu0 %1043
          %v1045 = vrot.slane %v1044, 1
          %v1046 = vrot.slane %v1044, 2
          %v1047 = vsel %vm820, %v1045, %v1046
          %v1049 = vmul.f32 %v1047, %v1042
          %1051 = vrot.lane.b32.xlu0 %v1049, 83
          %v1052 = vpop.permute.xlu0 %1051
          %v1053 = vrot.slane %v1052, 7
          %v1054 = vsel %vm530, %v1053, %v1052
          %v1056 = vadd.f32 %v1041, %v1054
          %v1057 = vstv %s392
          %1058 = vrot.lane.b32.xlu0 %v458, 109
          %v1059 = vpop.permute.xlu0 %1058
          %v1060 = vrot.slane %v1059, 1
          %v1061 = vrot.slane %v1059, 2
          %vm1062 = vcmask 891904
          %v1063 = vsel %vm1062, %v1060, %v1061
          %v1065 = vmul.f32 %v1063, %v1057
          %1067 = vrot.lane.b32.xlu0 %v1065, 83
          %v1068 = vpop.permute.xlu0 %1067
          %v1069 = vrot.slane %v1068, 7
          %v1070 = vsel %vm530, %v1069, %v1068
          %v1072 = vadd.f32 %v1056, %v1070
          %v1073 = vstv %s399
          %1074 = vrot.lane.b32.xlu0 %v458, 93
          %v1075 = vpop.permute.xlu0 %1074
          %v1076 = vrot.slane %v1075, 1
          %v1077 = vrot.slane %v1075, 2
          %vm1078 = vcmask 760832
          %v1079 = vsel %vm1078, %v1076, %v1077
          %v1081 = vmul.f32 %v1079, %v1073
          %1083 = vrot.lane.b32.xlu0 %v1081, 83
          %v1084 = vpop.permute.xlu0 %1083
          %v1085 = vrot.slane %v1084, 7
          %v1086 = vsel %vm530, %v1085, %v1084
          %v1088 = vadd.f32 %v1072, %v1086
          %v1089 = vstv %s406
          %1090 = vrot.lane.b32.xlu0 %v458, 77
          %v1091 = vpop.permute.xlu0 %1090
          %v1092 = vrot.slane %v1091, 1
          %v1093 = vrot.slane %v1091, 2
          %v1094 = vsel %vm505, %v1092, %v1093
          %v1096 = vmul.f32 %v1094, %v1089
          %1098 = vrot.lane.b32.xlu0 %v1096, 83
          %v1099 = vpop.permute.xlu0 %1098
          %v1100 = vrot.slane %v1099, 7
          %v1101 = vsel %vm530, %v1100, %v1099
          %v1103 = vadd.f32 %v1088, %v1101
          %s1104 = scalar_lea.vmem [#allocation10], 6
          %v1105 = vld [vmem:[%s1104] ss:$8 sm:$0x3]
          %1107 = vrot.lane.b32.xlu0 %v1105, 83
          %v1108 = vpop.permute.xlu0 %1107
          %v1109 = vrot.slane %v1108, 7
          %v1110 = vsel %vm530, %v1109, %v1108
          %v1112 = vmul.f32 %v1103, %v1110
          %1114 = vrot.lane.b32.xlu0 %v1112, 122
          %v1115 = vpop.permute.xlu0 %1114
          %v1116 = vrot.slane %v1115, 1
          %vm1117 = vcmask 998400
          %v1118 = vsel %vm1117, %v1115, %v1116
          %v1120 = vadd.f32 %v1021, %v1118
          %s1121 = scalar_lea.vmem [#allocation4], 1
          %v1122 = vld [vmem:[%s1121] ss:$2 sm:$0xf]
          %v1123 = vstv %s407
          %v1124 = vmul.f32 %v1122, %v1123
          %v1125 = vstv %s414
          %v1126 = vmul.f32 %v1122, %v1125
          %1128 = vrot.lane.b32.xlu0 %v1126, 112
          %v1129 = vpop.permute.xlu0 %1128
          %v1130 = vrot.slane %v1129, 1
          %v1131 = vsel %vm467, %v1129, %v1130
          %v1133 = vadd.f32 %v1124, %v1131
          %v1134 = vstv %s421
          %v1135 = vmul.f32 %v1122, %v1134
          %1137 = vrot.lane.b32.xlu0 %v1135, 96
          %v1138 = vpop.permute.xlu0 %1137
          %v1139 = vrot.slane %v1138, 1
          %v1140 = vsel %vm477, %v1138, %v1139
          %v1142 = vadd.f32 %v1133, %v1140
          %v1143 = vstv %s428
          %v1144 = vmul.f32 %v1122, %v1143
          %1146 = vrot.lane.b32.xlu0 %v1144, 80
          %v1147 = vpop.permute.xlu0 %1146
          %v1148 = vrot.slane %v1147, 1
          %v1149 = vsel %vm487, %v1147, %v1148
          %v1151 = vadd.f32 %v1142, %v1149
          %v1152 = vstv %s435
          %1154 = vrot.lane.b32.xlu0 %v1122, 115
          %v1155 = vpop.permute.xlu0 %1154
          %v1156 = vrot.slane %v1155, 1
          %v1157 = vrot.slane %v1155, 2
          %v1158 = vsel %vm497, %v1156, %v1157
          %v1160 = vmul.f32 %v1158, %v1152
          %1162 = vrot.lane.b32.xlu0 %v1160, 77
          %v1163 = vpop.permute.xlu0 %1162
          %v1164 = vrot.slane %v1163, 7
          %v1165 = vsel %vm505, %v1164, %v1163
          %v1167 = vadd.f32 %v1151, %v1165
          %v1168 = vstv %s442
          %1169 = vrot.lane.b32.xlu0 %v1122, 99
          %v1170 = vpop.permute.xlu0 %1169
          %v1171 = vrot.slane %v1170, 1
          %v1172 = vrot.slane %v1170, 2
          %v1173 = vsel %vm514, %v1171, %v1172
          %v1175 = vmul.f32 %v1173, %v1168
          %1177 = vrot.lane.b32.xlu0 %v1175, 77
          %v1178 = vpop.permute.xlu0 %1177
          %v1179 = vrot.slane %v1178, 7
          %v1180 = vsel %vm505, %v1179, %v1178
          %v1182 = vadd.f32 %v1167, %v1180
          %v1183 = vstv %s449
          %1184 = vrot.lane.b32.xlu0 %v1122, 83
          %v1185 = vpop.permute.xlu0 %1184
          %v1186 = vrot.slane %v1185, 1
          %v1187 = vrot.slane %v1185, 2
          %v1188 = vsel %vm530, %v1186, %v1187
          %v1190 = vmul.f32 %v1188, %v1183
          %1192 = vrot.lane.b32.xlu0 %v1190, 77
          %v1193 = vpop.permute.xlu0 %1192
          %v1194 = vrot.slane %v1193, 7
          %v1195 = vsel %vm505, %v1194, %v1193
          %v1197 = vadd.f32 %v1182, %v1195
          %v1198 = vmul.f32 %v1197, %v546
          %v1199 = vadd.f32 %v1120, %v1198
          %v1200 = vstv %s408
          %v1201 = vmul.f32 %v1122, %v1200
          %v1202 = vstv %s415
          %v1203 = vmul.f32 %v1122, %v1202
          %1205 = vrot.lane.b32.xlu0 %v1203, 112
          %v1206 = vpop.permute.xlu0 %1205
          %v1207 = vrot.slane %v1206, 1
          %v1208 = vsel %vm467, %v1206, %v1207
          %v1210 = vadd.f32 %v1201, %v1208
          %v1211 = vstv %s422
          %v1212 = vmul.f32 %v1122, %v1211
          %1214 = vrot.lane.b32.xlu0 %v1212, 96
          %v1215 = vpop.permute.xlu0 %1214
          %v1216 = vrot.slane %v1215, 1
          %v1217 = vsel %vm477, %v1215, %v1216
          %v1219 = vadd.f32 %v1210, %v1217
          %v1220 = vstv %s429
          %v1221 = vmul.f32 %v1122, %v1220
          %1223 = vrot.lane.b32.xlu0 %v1221, 80
          %v1224 = vpop.permute.xlu0 %1223
          %v1225 = vrot.slane %v1224, 1
          %v1226 = vsel %vm487, %v1224, %v1225
          %v1228 = vadd.f32 %v1219, %v1226
          %v1229 = vstv %s436
          %1230 = vrot.lane.b32.xlu0 %v1122, 114
          %v1231 = vpop.permute.xlu0 %1230
          %v1232 = vrot.slane %v1231, 1
          %v1233 = vrot.slane %v1231, 2
          %v1234 = vsel %vm584, %v1232, %v1233
          %v1236 = vmul.f32 %v1234, %v1229
          %1238 = vrot.lane.b32.xlu0 %v1236, 78
          %v1239 = vpop.permute.xlu0 %1238
          %v1240 = vrot.slane %v1239, 7
          %v1241 = vsel %vm592, %v1240, %v1239
          %v1243 = vadd.f32 %v1228, %v1241
          %v1244 = vstv %s443
          %1245 = vrot.lane.b32.xlu0 %v1122, 98
          %v1246 = vpop.permute.xlu0 %1245
          %v1247 = vrot.slane %v1246, 1
          %v1248 = vrot.slane %v1246, 2
          %v1249 = vsel %vm601, %v1247, %v1248
          %v1251 = vmul.f32 %v1249, %v1244
          %1253 = vrot.lane.b32.xlu0 %v1251, 78
          %v1254 = vpop.permute.xlu0 %1253
          %v1255 = vrot.slane %v1254, 7
          %v1256 = vsel %vm592, %v1255, %v1254
          %v1258 = vadd.f32 %v1243, %v1256
          %v1259 = vstv %s450
          %1260 = vrot.lane.b32.xlu0 %v1122, 82
          %v1261 = vpop.permute.xlu0 %1260
          %v1262 = vrot.slane %v1261, 1
          %v1263 = vrot.slane %v1261, 2
          %v1264 = vsel %vm617, %v1262, %v1263
          %v1266 = vmul.f32 %v1264, %v1259
          %1268 = vrot.lane.b32.xlu0 %v1266, 78
          %v1269 = vpop.permute.xlu0 %1268
          %v1270 = vrot.slane %v1269, 7
          %v1271 = vsel %vm592, %v1270, %v1269
          %v1273 = vadd.f32 %v1258, %v1271
          %v1274 = vmul.f32 %v1273, %v634
          %1276 = vrot.lane.b32.xlu0 %v1274, 127
          %v1277 = vpop.permute.xlu0 %1276
          %v1278 = vrot.slane %v1277, 1
          %v1279 = vsel %vm641, %v1277, %v1278
          %v1281 = vadd.f32 %v1199, %v1279
          %v1282 = vstv %s409
          %v1283 = vmul.f32 %v1122, %v1282
          %v1284 = vstv %s416
          %v1285 = vmul.f32 %v1122, %v1284
          %1287 = vrot.lane.b32.xlu0 %v1285, 112
          %v1288 = vpop.permute.xlu0 %1287
          %v1289 = vrot.slane %v1288, 1
          %v1290 = vsel %vm467, %v1288, %v1289
          %v1292 = vadd.f32 %v1283, %v1290
          %v1293 = vstv %s423
          %v1294 = vmul.f32 %v1122, %v1293
          %1296 = vrot.lane.b32.xlu0 %v1294, 96
          %v1297 = vpop.permute.xlu0 %1296
          %v1298 = vrot.slane %v1297, 1
          %v1299 = vsel %vm477, %v1297, %v1298
          %v1301 = vadd.f32 %v1292, %v1299
          %v1302 = vstv %s430
          %v1303 = vmul.f32 %v1122, %v1302
          %1305 = vrot.lane.b32.xlu0 %v1303, 80
          %v1306 = vpop.permute.xlu0 %1305
          %v1307 = vrot.slane %v1306, 1
          %v1308 = vsel %vm487, %v1306, %v1307
          %v1310 = vadd.f32 %v1301, %v1308
          %v1311 = vstv %s437
          %1312 = vrot.lane.b32.xlu0 %v1122, 113
          %v1313 = vpop.permute.xlu0 %1312
          %v1314 = vrot.slane %v1313, 1
          %v1315 = vrot.slane %v1313, 2
          %v1316 = vsel %vm679, %v1314, %v1315
          %v1318 = vmul.f32 %v1316, %v1311
          %1320 = vrot.lane.b32.xlu0 %v1318, 79
          %v1321 = vpop.permute.xlu0 %1320
          %v1322 = vrot.slane %v1321, 7
          %v1323 = vsel %vm687, %v1322, %v1321
          %v1325 = vadd.f32 %v1310, %v1323
          %v1326 = vstv %s444
          %1327 = vrot.lane.b32.xlu0 %v1122, 97
          %v1328 = vpop.permute.xlu0 %1327
          %v1329 = vrot.slane %v1328, 1
          %v1330 = vrot.slane %v1328, 2
          %v1331 = vsel %vm696, %v1329, %v1330
          %v1333 = vmul.f32 %v1331, %v1326
          %1335 = vrot.lane.b32.xlu0 %v1333, 79
          %v1336 = vpop.permute.xlu0 %1335
          %v1337 = vrot.slane %v1336, 7
          %v1338 = vsel %vm687, %v1337, %v1336
          %v1340 = vadd.f32 %v1325, %v1338
          %v1341 = vstv %s451
          %1342 = vrot.lane.b32.xlu0 %v1122, 81
          %v1343 = vpop.permute.xlu0 %1342
          %v1344 = vrot.slane %v1343, 1
          %v1345 = vrot.slane %v1343, 2
          %v1346 = vsel %vm712, %v1344, %v1345
          %v1348 = vmul.f32 %v1346, %v1341
          %1350 = vrot.lane.b32.xlu0 %v1348, 79
          %v1351 = vpop.permute.xlu0 %1350
          %v1352 = vrot.slane %v1351, 7
          %v1353 = vsel %vm687, %v1352, %v1351
          %v1355 = vadd.f32 %v1340, %v1353
          %v1356 = vmul.f32 %v1355, %v729
          %1358 = vrot.lane.b32.xlu0 %v1356, 126
          %v1359 = vpop.permute.xlu0 %1358
          %v1360 = vrot.slane %v1359, 1
          %v1361 = vsel %vm736, %v1359, %v1360
          %v1363 = vadd.f32 %v1281, %v1361
          %v1364 = vstv %s410
          %v1365 = vmul.f32 %v1122, %v1364
          %v1366 = vstv %s417
          %v1367 = vmul.f32 %v1122, %v1366
          %1369 = vrot.lane.b32.xlu0 %v1367, 112
          %v1370 = vpop.permute.xlu0 %1369
          %v1371 = vrot.slane %v1370, 1
          %v1372 = vsel %vm467, %v1370, %v1371
          %v1374 = vadd.f32 %v1365, %v1372
          %v1375 = vstv %s424
          %v1376 = vmul.f32 %v1122, %v1375
          %1378 = vrot.lane.b32.xlu0 %v1376, 96
          %v1379 = vpop.permute.xlu0 %1378
          %v1380 = vrot.slane %v1379, 1
          %v1381 = vsel %vm477, %v1379, %v1380
          %v1383 = vadd.f32 %v1374, %v1381
          %v1384 = vstv %s431
          %v1385 = vrot.slane %v1122, 1
          %v1387 = vmul.f32 %v1385, %v1384
          %1389 = vrot.lane.b32.xlu0 %v1387, 80
          %v1390 = vpop.permute.xlu0 %1389
          %v1391 = vrot.slane %v1390, 7
          %v1392 = vsel %vm487, %v1391, %v1390
          %v1394 = vadd.f32 %v1383, %v1392
          %v1395 = vstv %s438
          %1396 = vrot.lane.b32.xlu0 %v1122, 112
          %v1397 = vpop.permute.xlu0 %1396
          %v1398 = vrot.slane %v1397, 1
          %v1399 = vrot.slane %v1397, 2
          %v1400 = vsel %vm467, %v1398, %v1399
          %v1402 = vmul.f32 %v1400, %v1395
          %1404 = vrot.lane.b32.xlu0 %v1402, 80
          %v1405 = vpop.permute.xlu0 %1404
          %v1406 = vrot.slane %v1405, 7
          %v1407 = vsel %vm487, %v1406, %v1405
          %v1409 = vadd.f32 %v1394, %v1407
          %v1410 = vstv %s445
          %1411 = vrot.lane.b32.xlu0 %v1122, 96
          %v1412 = vpop.permute.xlu0 %1411
          %v1413 = vrot.slane %v1412, 1
          %v1414 = vrot.slane %v1412, 2
          %v1415 = vsel %vm477, %v1413, %v1414
          %v1417 = vmul.f32 %v1415, %v1410
          %1419 = vrot.lane.b32.xlu0 %v1417, 80
          %v1420 = vpop.permute.xlu0 %1419
          %v1421 = vrot.slane %v1420, 7
          %v1422 = vsel %vm487, %v1421, %v1420
          %v1424 = vadd.f32 %v1409, %v1422
          %v1425 = vstv %s452
          %1426 = vrot.lane.b32.xlu0 %v1122, 80
          %v1427 = vpop.permute.xlu0 %1426
          %v1428 = vrot.slane %v1427, 1
          %v1429 = vrot.slane %v1427, 2
          %v1430 = vsel %vm487, %v1428, %v1429
          %v1432 = vmul.f32 %v1430, %v1425
          %1434 = vrot.lane.b32.xlu0 %v1432, 80
          %v1435 = vpop.permute.xlu0 %1434
          %v1436 = vrot.slane %v1435, 7
          %v1437 = vsel %vm487, %v1436, %v1435
          %v1439 = vadd.f32 %v1424, %v1437
          %1441 = vrot.lane.b32.xlu0 %v1439, 125
          %v1442 = vpop.permute.xlu0 %1441
          %v1443 = vrot.slane %v1442, 1
          %v1444 = vsel %vm820, %v1442, %v1443
          %v1446 = vadd.f32 %v1363, %v1444
          %v1447 = vstv %s411
          %v1448 = vmul.f32 %v1122, %v1447
          %v1449 = vstv %s418
          %v1450 = vmul.f32 %v1122, %v1449
          %1452 = vrot.lane.b32.xlu0 %v1450, 112
          %v1453 = vpop.permute.xlu0 %1452
          %v1454 = vrot.slane %v1453, 1
          %v1455 = vsel %vm467, %v1453, %v1454
          %v1457 = vadd.f32 %v1448, %v1455
          %v1458 = vstv %s425
          %v1459 = vmul.f32 %v1122, %v1458
          %1461 = vrot.lane.b32.xlu0 %v1459, 96
          %v1462 = vpop.permute.xlu0 %1461
          %v1463 = vrot.slane %v1462, 1
          %v1464 = vsel %vm477, %v1462, %v1463
          %v1466 = vadd.f32 %v1457, %v1464
          %v1467 = vstv %s432
          %1468 = vrot.lane.b32.xlu0 %v1122, 127
          %v1469 = vpop.permute.xlu0 %1468
          %v1470 = vrot.slane %v1469, 1
          %v1471 = vrot.slane %v1469, 2
          %v1472 = vsel %vm641, %v1470, %v1471
          %v1474 = vmul.f32 %v1472, %v1467
          %1476 = vrot.lane.b32.xlu0 %v1474, 81
          %v1477 = vpop.permute.xlu0 %1476
          %v1478 = vrot.slane %v1477, 7
          %v1479 = vsel %vm712, %v1478, %v1477
          %v1481 = vadd.f32 %v1466, %v1479
          %v1482 = vstv %s439
          %1483 = vrot.lane.b32.xlu0 %v1122, 111
          %v1484 = vpop.permute.xlu0 %1483
          %v1485 = vrot.slane %v1484, 1
          %v1486 = vrot.slane %v1484, 2
          %v1487 = vsel %vm864, %v1485, %v1486
          %v1489 = vmul.f32 %v1487, %v1482
          %1491 = vrot.lane.b32.xlu0 %v1489, 81
          %v1492 = vpop.permute.xlu0 %1491
          %v1493 = vrot.slane %v1492, 7
          %v1494 = vsel %vm712, %v1493, %v1492
          %v1496 = vadd.f32 %v1481, %v1494
          %v1497 = vstv %s446
          %1498 = vrot.lane.b32.xlu0 %v1122, 95
          %v1499 = vpop.permute.xlu0 %1498
          %v1500 = vrot.slane %v1499, 1
          %v1501 = vrot.slane %v1499, 2
          %v1502 = vsel %vm880, %v1500, %v1501
          %v1504 = vmul.f32 %v1502, %v1497
          %1506 = vrot.lane.b32.xlu0 %v1504, 81
          %v1507 = vpop.permute.xlu0 %1506
          %v1508 = vrot.slane %v1507, 7
          %v1509 = vsel %vm712, %v1508, %v1507
          %v1511 = vadd.f32 %v1496, %v1509
          %v1512 = vstv %s453
          %1513 = vrot.lane.b32.xlu0 %v1122, 79
          %v1514 = vpop.permute.xlu0 %1513
          %v1515 = vrot.slane %v1514, 1
          %v1516 = vrot.slane %v1514, 2
          %v1517 = vsel %vm687, %v1515, %v1516
          %v1519 = vmul.f32 %v1517, %v1512
          %1521 = vrot.lane.b32.xlu0 %v1519, 81
          %v1522 = vpop.permute.xlu0 %1521
          %v1523 = vrot.slane %v1522, 7
          %v1524 = vsel %vm712, %v1523, %v1522
          %v1526 = vadd.f32 %v1511, %v1524
          %v1527 = vmul.f32 %v1526, %v912
          %1529 = vrot.lane.b32.xlu0 %v1527, 124
          %v1530 = vpop.permute.xlu0 %1529
          %v1531 = vrot.slane %v1530, 1
          %v1532 = vsel %vm919, %v1530, %v1531
          %v1534 = vadd.f32 %v1446, %v1532
          %v1535 = vstv %s412
          %v1536 = vmul.f32 %v1122, %v1535
          %v1537 = vstv %s419
          %v1538 = vmul.f32 %v1122, %v1537
          %1540 = vrot.lane.b32.xlu0 %v1538, 112
          %v1541 = vpop.permute.xlu0 %1540
          %v1542 = vrot.slane %v1541, 1
          %v1543 = vsel %vm467, %v1541, %v1542
          %v1545 = vadd.f32 %v1536, %v1543
          %v1546 = vstv %s426
          %v1547 = vmul.f32 %v1122, %v1546
          %1549 = vrot.lane.b32.xlu0 %v1547, 96
          %v1550 = vpop.permute.xlu0 %1549
          %v1551 = vrot.slane %v1550, 1
          %v1552 = vsel %vm477, %v1550, %v1551
          %v1554 = vadd.f32 %v1545, %v1552
          %v1555 = vstv %s433
          %1556 = vrot.lane.b32.xlu0 %v1122, 126
          %v1557 = vpop.permute.xlu0 %1556
          %v1558 = vrot.slane %v1557, 1
          %v1559 = vrot.slane %v1557, 2
          %v1560 = vsel %vm736, %v1558, %v1559
          %v1562 = vmul.f32 %v1560, %v1555
          %1564 = vrot.lane.b32.xlu0 %v1562, 82
          %v1565 = vpop.permute.xlu0 %1564
          %v1566 = vrot.slane %v1565, 7
          %v1567 = vsel %vm617, %v1566, %v1565
          %v1569 = vadd.f32 %v1554, %v1567
          %v1570 = vstv %s440
          %1571 = vrot.lane.b32.xlu0 %v1122, 110
          %v1572 = vpop.permute.xlu0 %1571
          %v1573 = vrot.slane %v1572, 1
          %v1574 = vrot.slane %v1572, 2
          %v1575 = vsel %vm963, %v1573, %v1574
          %v1577 = vmul.f32 %v1575, %v1570
          %1579 = vrot.lane.b32.xlu0 %v1577, 82
          %v1580 = vpop.permute.xlu0 %1579
          %v1581 = vrot.slane %v1580, 7
          %v1582 = vsel %vm617, %v1581, %v1580
          %v1584 = vadd.f32 %v1569, %v1582
          %v1585 = vstv %s447
          %1586 = vrot.lane.b32.xlu0 %v1122, 94
          %v1587 = vpop.permute.xlu0 %1586
          %v1588 = vrot.slane %v1587, 1
          %v1589 = vrot.slane %v1587, 2
          %v1590 = vsel %vm979, %v1588, %v1589
          %v1592 = vmul.f32 %v1590, %v1585
          %1594 = vrot.lane.b32.xlu0 %v1592, 82
          %v1595 = vpop.permute.xlu0 %1594
          %v1596 = vrot.slane %v1595, 7
          %v1597 = vsel %vm617, %v1596, %v1595
          %v1599 = vadd.f32 %v1584, %v1597
          %v1600 = vstv %s454
          %1601 = vrot.lane.b32.xlu0 %v1122, 78
          %v1602 = vpop.permute.xlu0 %1601
          %v1603 = vrot.slane %v1602, 1
          %v1604 = vrot.slane %v1602, 2
          %v1605 = vsel %vm592, %v1603, %v1604
          %v1607 = vmul.f32 %v1605, %v1600
          %1609 = vrot.lane.b32.xlu0 %v1607, 82
          %v1610 = vpop.permute.xlu0 %1609
          %v1611 = vrot.slane %v1610, 7
          %v1612 = vsel %vm617, %v1611, %v1610
          %v1614 = vadd.f32 %v1599, %v1612
          %v1615 = vmul.f32 %v1614, %v1011
          %1617 = vrot.lane.b32.xlu0 %v1615, 123
          %v1618 = vpop.permute.xlu0 %1617
          %v1619 = vrot.slane %v1618, 1
          %v1620 = vsel %vm1018, %v1618, %v1619
          %v1622 = vadd.f32 %v1534, %v1620
          %v1623 = vstv %s413
          %v1624 = vmul.f32 %v1122, %v1623
          %v1625 = vstv %s420
          %v1626 = vmul.f32 %v1122, %v1625
          %1628 = vrot.lane.b32.xlu0 %v1626, 112
          %v1629 = vpop.permute.xlu0 %1628
          %v1630 = vrot.slane %v1629, 1
          %v1631 = vsel %vm467, %v1629, %v1630
          %v1633 = vadd.f32 %v1624, %v1631
          %v1634 = vstv %s427
          %v1635 = vmul.f32 %v1122, %v1634
          %1637 = vrot.lane.b32.xlu0 %v1635, 96
          %v1638 = vpop.permute.xlu0 %1637
          %v1639 = vrot.slane %v1638, 1
          %v1640 = vsel %vm477, %v1638, %v1639
          %v1642 = vadd.f32 %v1633, %v1640
          %v1643 = vstv %s434
          %1644 = vrot.lane.b32.xlu0 %v1122, 125
          %v1645 = vpop.permute.xlu0 %1644
          %v1646 = vrot.slane %v1645, 1
          %v1647 = vrot.slane %v1645, 2
          %v1648 = vsel %vm820, %v1646, %v1647
          %v1650 = vmul.f32 %v1648, %v1643
          %1652 = vrot.lane.b32.xlu0 %v1650, 83
          %v1653 = vpop.permute.xlu0 %1652
          %v1654 = vrot.slane %v1653, 7
          %v1655 = vsel %vm530, %v1654, %v1653
          %v1657 = vadd.f32 %v1642, %v1655
          %v1658 = vstv %s441
          %1659 = vrot.lane.b32.xlu0 %v1122, 109
          %v1660 = vpop.permute.xlu0 %1659
          %v1661 = vrot.slane %v1660, 1
          %v1662 = vrot.slane %v1660, 2
          %v1663 = vsel %vm1062, %v1661, %v1662
          %v1665 = vmul.f32 %v1663, %v1658
          %1667 = vrot.lane.b32.xlu0 %v1665, 83
          %v1668 = vpop.permute.xlu0 %1667
          %v1669 = vrot.slane %v1668, 7
          %v1670 = vsel %vm530, %v1669, %v1668
          %v1672 = vadd.f32 %v1657, %v1670
          %v1673 = vstv %s448
          %1674 = vrot.lane.b32.xlu0 %v1122, 93
          %v1675 = vpop.permute.xlu0 %1674
          %v1676 = vrot.slane %v1675, 1
          %v1677 = vrot.slane %v1675, 2
          %v1678 = vsel %vm1078, %v1676, %v1677
          %v1680 = vmul.f32 %v1678, %v1673
          %1682 = vrot.lane.b32.xlu0 %v1680, 83
          %v1683 = vpop.permute.xlu0 %1682
          %v1684 = vrot.slane %v1683, 7
          %v1685 = vsel %vm530, %v1684, %v1683
          %v1687 = vadd.f32 %v1672, %v1685
          %v1688 = vstv %s455
          %1689 = vrot.lane.b32.xlu0 %v1122, 77
          %v1690 = vpop.permute.xlu0 %1689
          %v1691 = vrot.slane %v1690, 1
          %v1692 = vrot.slane %v1690, 2
          %v1693 = vsel %vm505, %v1691, %v1692
          %v1695 = vmul.f32 %v1693, %v1688
          %1697 = vrot.lane.b32.xlu0 %v1695, 83
          %v1698 = vpop.permute.xlu0 %1697
          %v1699 = vrot.slane %v1698, 7
          %v1700 = vsel %vm530, %v1699, %v1698
          %v1702 = vadd.f32 %v1687, %v1700
          %v1703 = vmul.f32 %v1702, %v1110
          %1705 = vrot.lane.b32.xlu0 %v1703, 122
          %v1706 = vpop.permute.xlu0 %1705
          %v1707 = vrot.slane %v1706, 1
          %v1708 = vsel %vm1117, %v1706, %v1707
          %v1710 = vadd.f32 %v1622, %v1708
          %v1711 = vxor.u32 %v1710, 2147483648
          %v1712 = vmul.f32 %v1711, 1.442695
          %v1713 = vpow.pop %v1712
          %v1714 = vadd.f32 %v1713, 1.0
          %v1715 = vrcp.pop %v1714
          %v1716 = vmul.f32 1.0, %v1715
          %1718 = vrot.lane.b32.xlu0 %v1716, 51
          %v1719 = vpop.permute.xlu0 %1718
          %v1720 = vrot.slane %v1719, 1
          %vm1721 = vcmask 416768
          %v1722 = vsel %vm1721, %v1719, %v1720
          %1724 = vst.msk [vmem:[%s257] sm:$0x3] %vm310, %v1722
        $region56: #{tpu_custom_call.1} parent=35 // pred_fallthru
          _
        %s1725 = sand.u32 %s135, 1
        %s1726 = scalar_lea.sflag [#allocation8], %s1725
        %s1727 = sand.u32 %s135, 1
        %s1728 = smul.addr %s1727, 2
        %s1729 = scalar_lea.vmem [#allocation13], %s1728
        // Predicated region
        $region57: #{tpu_custom_call.1} parent=35 // pred_check
          %p1730 = pneg %p145
        $region58: #{tpu_custom_call.1} parent=35 // pred_check_branch
          %1732 = sbr.rel (%p1730) target = $region60
        $region59: #{tpu_custom_call.1} parent=35 // pred_region
          %s1734 = ssub.s32 32, 32
          %1735 = vsyncadd %s1726, %s1734
          %s1736 = smul.addr %s28, 2
          %s1737 = smul.addr %s1736, 16
          %s1738 = scalar_lea.hbm %s4, %s1737
          %s1740 = sshll.u32 %s1729, 4
          %s1741 = int_to_ptr.vmem [resolvable:$true] %s1740
          %1743 = dma.vmem_to_hbm [thread:$0]  %s1741, 32, %s1738, %s1726
        $region60: #{tpu_custom_call.1} parent=35 // pred_fallthru
          _
      $region36: #{tpu_custom_call.1} parent=5 // pred_fallthru
        _
      %p1744 = scmp.le.s32.totalorder 2, %s19
      // Predicated region
      $region61: #{tpu_custom_call.1} parent=5 // pred_check
        %p1745 = pneg %p1744
      $region62: #{tpu_custom_call.1} parent=5 // pred_check_branch
        %1747 = sbr.rel (%p1745) target = $region64
      $region63: #{tpu_custom_call.1} parent=5 // pred_region
        %s1748 = ssub.s32 %s19, 2
        // Predicated region
        $region65: #{tpu_custom_call.1} parent=63 // pred_check
          %p1749 = pneg %p151
        $region66: #{tpu_custom_call.1} parent=63 // pred_check_branch
          %1751 = sbr.rel (%p1749) target = $region68
        $region67: #{tpu_custom_call.1} parent=63 // pred_region
          %s1752 = sand.u32 %s136, 1
          %s1753 = scalar_lea.sflag [#allocation8], %s1752
          %s1754 = sand.u32 %s136, 1
          %s1755 = smul.addr %s1754, 2
          %s1756 = scalar_lea.vmem [#allocation13], %s1755
          %1757 = dma.done %s1753, 32
        $region68: #{tpu_custom_call.1} parent=63 // pred_fallthru
          _
      $region64: #{tpu_custom_call.1} parent=5 // pred_fallthru
        _
    $region6: #{tpu_custom_call.1} parent=1 // loop_footer
      %s23 = sadd.s32 1, %s19
    $region7: #{tpu_custom_call.1} parent=1 // loop_footer_branch
      %18 = sbr.rel target = $region3
    $region8: #{tpu_custom_call.1} parent=1 // loop_exit
      _
    %1758 = vsyncpa [#allocation7], 1
    %s1759 = scalar_lea.sflag [#allocation7], 1
    %1760 = vsyncpa %s1759, 1
    %1761 = vsyncpa [#allocation12], 1
    %s1762 = scalar_lea.sflag [#allocation12], 1
    %1763 = vsyncpa %s1762, 1
    %1764 = vsyncpa [#allocation8], 1
    %s1765 = scalar_lea.sflag [#allocation8], 1
    %1766 = vsyncpa %s1765, 1
    %1767 = vsyncpa [#allocation9], 1
    %s1768 = scalar_lea.sflag [#allocation9], 1
    %1769 = vsyncpa %s1768, 1

</llo_original>
